<compile_context>
chip_gen: v6e
topology: v6e:2x2x1
jax: 0.10.0
libtpu: 0.0.40
codegen_flags: <defaults>
</compile_context>

<pallas_src>
import functools

import jax
import jax.numpy as jnp
from jax.experimental import pallas as pl
from jax.experimental.pallas import tpu as pltpu


# ----------------------------------------------------------------------------
# Kernel
# ----------------------------------------------------------------------------
def actor_kernel(feature_dim,
                 obs_ref,          # (tb, repr_dim)  f32
                 w1_ref,           # (repr_dim, Fp)  bf16
                 w2_ref,           # (Fp, Hp)        bf16
                 w3_ref,           # (Hp, Hp)        bf16
                 w4_ref,           # (Hp, Ap)        bf16
                 vec_ref,          # (8, L)          f32  rows: b1,gamma,beta,b2,b3,b4,0,0
                 mu_ref):          # (tb, Ap)        bf16
    Fp = w1_ref.shape[1]
    Hp = w2_ref.shape[1]
    Ap = w4_ref.shape[1]
    inv_feat = 1.0 / float(feature_dim)

    # ---- trunk: Linear -> LayerNorm -> Tanh -------------------------------
    # bf16 operands on the MXU (obs cast in-kernel), f32 accumulation.
    obs = obs_ref[...].astype(jnp.bfloat16)
    h = jnp.dot(obs, w1_ref[...],
                preferred_element_type=jnp.float32) + vec_ref[0:1, :Fp]   # + b1

    # Two-pass LayerNorm over the *real* feature_dim. Padded lanes of h are
    # exactly zero (padded w1 cols / b1 entries are zero) so the plain sum gives
    # the true mean; the centered values are masked in the pad region so the
    # variance sum is exact as well.
    mean = jnp.sum(h, axis=-1, keepdims=True) * inv_feat
    d = h - mean
    if Fp != feature_dim:
        lane = jax.lax.broadcasted_iota(jnp.int32, h.shape, 1)
        d = jnp.where(lane < feature_dim, d, 0.0)
    var = jnp.sum(d * d, axis=-1, keepdims=True) * inv_feat
    scale = jax.lax.rsqrt(var + 1e-5) * vec_ref[1:2, :Fp]   # rsqrt on EUP; gamma folded
    h = jnp.tanh(d * scale + vec_ref[2:3, :Fp])             # + beta; pad lanes stay 0

    # ---- policy MLP: Linear -> ReLU -> Linear -> ReLU -> Linear -----------
    x = jnp.dot(h.astype(jnp.bfloat16), w2_ref[...],
                preferred_element_type=jnp.float32) + vec_ref[3:4, :Hp]   # + b2
    x = jnp.maximum(x, 0.0)
    x = jnp.dot(x.astype(jnp.bfloat16), w3_ref[...],
                preferred_element_type=jnp.float32) + vec_ref[4:5, :Hp]   # + b3
    x = jnp.maximum(x, 0.0)
    mu = jnp.dot(x.astype(jnp.bfloat16), w4_ref[...],
                 preferred_element_type=jnp.float32) + vec_ref[5:6, :Ap]  # + b4
    mu_ref[...] = mu.astype(mu_ref.dtype)


# ----------------------------------------------------------------------------
# Param preparation (one-time, hoisted out of the forward path)
# ----------------------------------------------------------------------------
def _round_up(n, m=128):
    return ((n + m - 1) // m) * m


def _pad2d(x, rows, cols):
    pr, pc = rows - x.shape[0], cols - x.shape[1]
    if pr == 0 and pc == 0:
        return x
    return jnp.pad(x, ((0, pr), (0, pc)))


def prepare_actor_params(params):
    """Pad to lane-dense (multiple-of-128) widths, cast matmul weights to bf16,
    and pack the six small vectors into one (8, L) f32 array. Call ONCE; pass
    the result to actor_forward."""
    w1, b1, g, beta, w2, b2, w3, b3, w4, b4 = params
    repr_dim, feature_dim = w1.shape
    hidden_dim = w2.shape[1]
    act_dim = w4.shape[1]

    Fp = _round_up(feature_dim)
    Hp = _round_up(hidden_dim)
    Ap = _round_up(act_dim)
    L = max(Fp, Hp, Ap)

    bf16 = jnp.bfloat16
    w1p = _pad2d(w1, repr_dim, Fp).astype(bf16)
    w2p = _pad2d(w2, Fp, Hp).astype(bf16)
    w3p = _pad2d(w3, Hp, Hp).astype(bf16)
    w4p = _pad2d(w4, Hp, Ap).astype(bf16)

    def row(v):
        v = jnp.asarray(v, jnp.float32).reshape(1, -1)
        return _pad2d(v, 1, L)

    # rows: 0=b1, 1=gamma, 2=beta, 3=b2, 4=b3, 5=b4, 6-7=zero (pad to 8 sublanes)
    vec = jnp.concatenate(
        [row(b1), row(g), row(beta), row(b2), row(b3), row(b4),
         jnp.zeros((2, L), jnp.float32)], axis=0)

    return {
        "w1": w1p, "w2": w2p, "w3": w3p, "w4": w4p, "vec": vec,
        "feature_dim": int(feature_dim), "act_dim": int(act_dim),
    }


# ----------------------------------------------------------------------------
# Tiling policy (generation-aware)
# ----------------------------------------------------------------------------
def _num_tensorcores():
    try:
        kind = jax.devices()[0].device_kind.lower()
    except Exception:
        return 1
    return 2 if "v7" in kind else 1


def _pick_tb(B, num_tc):
    MAX_TB = 1024
    # v7x: exactly 2 parallel steps, but only if each gets a full-MXU M tile.
    if num_tc >= 2 and B % 16 == 0 and 256 <= (B // 2) <= MAX_TB:
        return B // 2
    # v5e/v6e (single TC): the grid is a serial loop -> one step if it fits.
    if B <= MAX_TB:
        return B
    for cand in range(MAX_TB, 7, -8):
        if B % cand == 0:
            return cand
    return B


# ----------------------------------------------------------------------------
# Forward wrapper
# ----------------------------------------------------------------------------
def actor_forward(obs, std, prepared, *, tb=None):
    """`std` is accepted for parity with the PyTorch forward signature but (like
    the reference) does not affect the output. `prepared` comes from
    prepare_actor_params()."""
    del std
    B, repr_dim = obs.shape
    w1p, w2p, w3p, w4p, vec = (prepared["w1"], prepared["w2"], prepared["w3"],
                               prepared["w4"], prepared["vec"])
    feature_dim = prepared["feature_dim"]
    act_dim = prepared["act_dim"]
    Ap = w4p.shape[1]

    if tb is None:
        tb = _pick_tb(B, _num_tensorcores())
    assert B % tb == 0

    def full(arr):  # un-tiled parameter block: VMEM-resident across grid steps
        shape = arr.shape
        return pl.BlockSpec(shape, lambda i: tuple(0 for _ in shape))

    kernel = functools.partial(actor_kernel, feature_dim)
    mu_padded = pl.pallas_call(
        kernel,
        out_shape=jax.ShapeDtypeStruct((B, Ap), jnp.bfloat16),
        grid_spec=pltpu.PrefetchScalarGridSpec(
            num_scalar_prefetch=0,
            grid=(B // tb,),
            in_specs=[
                pl.BlockSpec((tb, repr_dim), lambda i: (i, 0)),   # obs tile (f32, pipelined)
                full(w1p), full(w2p), full(w3p), full(w4p),
                full(vec),
            ],
            out_specs=pl.BlockSpec((tb, Ap), lambda i: (i, 0)),   # lane-dense bf16 output
        ),
        compiler_params=pltpu.CompilerParams(
            dimension_semantics=("parallel",)),
    )(obs, w1p, w2p, w3p, w4p, vec)

    return mu_padded[:, :act_dim].astype(jnp.float32)


# ----------------------------------------------------------------------------
# Synthetic init + pure-JAX reference
# ----------------------------------------------------------------------------
def init_params(key, repr_dim, feature_dim, hidden_dim, act_dim):
    """Deterministic synthetic init (stand-in for utils.weight_init).
    Linear weights are stored as (in_dim, out_dim)."""
    ks = jax.random.split(key, 8)

    def lin(kw, kb, din, dout):
        w = jax.random.normal(kw, (din, dout), jnp.float32) / jnp.sqrt(din)
        b = jax.random.normal(kb, (1, dout), jnp.float32) * 0.01
        return w, b

    w1, b1 = lin(ks[0], ks[1], repr_dim, feature_dim)
    g = jnp.ones((1, feature_dim), jnp.float32)      # LayerNorm weight
    beta = jnp.zeros((1, feature_dim), jnp.float32)  # LayerNorm bias
    w2, b2 = lin(ks[2], ks[3], feature_dim, hidden_dim)
    w3, b3 = lin(ks[4], ks[5], hidden_dim, hidden_dim)
    w4, b4 = lin(ks[6], ks[7], hidden_dim, act_dim)
    return (w1, b1, g, beta, w2, b2, w3, b3, w4, b4)


def actor_reference(obs, params):
    """Pure-JAX reference using the same bf16-operand / f32-accumulate matmuls
    as the kernel (elementwise math in f32)."""
    w1, b1, g, beta, w2, b2, w3, b3, w4, b4 = params
    bf = jnp.bfloat16
    h = jnp.dot(obs.astype(bf), w1.astype(bf),
                preferred_element_type=jnp.float32) + b1
    mean = h.mean(-1, keepdims=True)
    var = ((h - mean) ** 2).mean(-1, keepdims=True)
    h = (h - mean) * jax.lax.rsqrt(var + 1e-5) * g + beta
    h = jnp.tanh(h)
    x = jnp.maximum(jnp.dot(h.astype(bf), w2.astype(bf),
                            preferred_element_type=jnp.float32) + b2, 0.0)
    x = jnp.maximum(jnp.dot(x.astype(bf), w3.astype(bf),
                            preferred_element_type=jnp.float32) + b3, 0.0)
    return jnp.dot(x.astype(bf), w4.astype(bf),
                   preferred_element_type=jnp.float32) + b4


if __name__ == "__main__":
    # Small model dims consistent with the module's constructor.
    B, repr_dim, feature_dim, hidden_dim = 256, 64, 32, 32
    action_shape = (4,)

    key = jax.random.PRNGKey(0)
    k_obs, k_par = jax.random.split(key)
    obs = jax.random.normal(k_obs, (B, repr_dim), jnp.float32)
    std = jnp.float32(0.1)  # unused by forward, kept for signature parity
    params = init_params(k_par, repr_dim, feature_dim, hidden_dim, action_shape[0])

    # One-time parameter preparation (hoisted out of the per-call forward path).
    prepared = prepare_actor_params(params)

    mu = actor_forward(obs, std, prepared)
    mu = jax.block_until_ready(mu)

    ref = actor_reference(obs, params)
    assert mu.shape == (B, action_shape[0])
    assert jnp.allclose(mu, ref, atol=2e-2, rtol=2e-2), \
        float(jnp.max(jnp.abs(mu - ref)))

    print("KERNEL_OK")
</pallas_src>

<mosaic_0001>
module attributes {stable_mosaic.version = 11 : i64} {
  func.func @actor_kernel(%arg0: i32, %arg1: memref<256x64xf32, #tpu.memory_space<vmem>>, %arg2: memref<64x128xbf16, #tpu.memory_space<vmem>>, %arg3: memref<128x128xbf16, #tpu.memory_space<vmem>>, %arg4: memref<128x128xbf16, #tpu.memory_space<vmem>>, %arg5: memref<128x128xbf16, #tpu.memory_space<vmem>>, %arg6: memref<8x128xf32, #tpu.memory_space<vmem>>, %arg7: memref<256x128xbf16, #tpu.memory_space<vmem>>) attributes {dimension_semantics = [#tpu.dimension_semantics<parallel>], iteration_bounds = array<i64: 1>, scalar_prefetch = 0 : i64, scratch_operands = 0 : i64, tpu.core_type = #tpu.core_type<tc>, window_params = [{transform_indices = @transform_0, window_bounds = array<i64: 256, 64>}, {pipeline_mode = #tpu.pipeline_mode<synchronous>, transform_indices = @transform_1, window_bounds = array<i64: 64, 128>}, {pipeline_mode = #tpu.pipeline_mode<synchronous>, transform_indices = @transform_2, window_bounds = array<i64: 128, 128>}, {pipeline_mode = #tpu.pipeline_mode<synchronous>, transform_indices = @transform_3, window_bounds = array<i64: 128, 128>}, {pipeline_mode = #tpu.pipeline_mode<synchronous>, transform_indices = @transform_4, window_bounds = array<i64: 128, 128>}, {pipeline_mode = #tpu.pipeline_mode<synchronous>, transform_indices = @transform_5, window_bounds = array<i64: 8, 128>}, {transform_indices = @transform_6, window_bounds = array<i64: 256, 128>}]} {
    %c0 = arith.constant 0 : index
    %c0_0 = arith.constant 0 : index
    %0 = vector.load %arg1[%c0, %c0_0] : memref<256x64xf32, #tpu.memory_space<vmem>>, vector<256x64xf32>
    %1 = arith.truncf %0 : vector<256x64xf32> to vector<256x64xbf16>
    %c0_1 = arith.constant 0 : index
    %c0_2 = arith.constant 0 : index
    %2 = vector.load %arg2[%c0_1, %c0_2] : memref<64x128xbf16, #tpu.memory_space<vmem>>, vector<64x128xbf16>
    %cst = arith.constant dense<0.000000e+00> : vector<256x128xf32>
    %3 = tpu.matmul %1, %2, %cst {dimension_numbers = #tpu.dot_dimension_numbers<[1], [0], [0], [1], [0, 0, 1, 1], [], []>} : vector<256x64xbf16>, vector<64x128xbf16>, vector<256x128xf32> -> vector<256x128xf32>
    %c0_3 = arith.constant 0 : index
    %c0_4 = arith.constant 0 : index
    %4 = vector.load %arg6[%c0_3, %c0_4] : memref<8x128xf32, #tpu.memory_space<vmem>>, vector<1x128xf32>
    %5 = vector.broadcast %4 : vector<1x128xf32> to vector<256x128xf32>
    %6 = arith.addf %3, %5 : vector<256x128xf32>
    %cst_5 = arith.constant dense<0.000000e+00> : vector<256xf32>
    %7 = vector.multi_reduction <add>, %6, %cst_5 [1] : vector<256x128xf32> to vector<256xf32>
    %8 = vector.shape_cast %7 : vector<256xf32> to vector<256x1xf32>
    %cst_6 = arith.constant 3.125000e-02 : f32
    %9 = vector.broadcast %cst_6 : f32 to vector<256x1xf32>
    %10 = arith.mulf %8, %9 : vector<256x1xf32>
    %11 = vector.broadcast %10 : vector<256x1xf32> to vector<256x128xf32>
    %12 = arith.subf %6, %11 : vector<256x128xf32>
    %13 = tpu.iota {dimensions = array<i32: 1>} : vector<256x128xi32>
    %c32_i32 = arith.constant 32 : i32
    %14 = vector.broadcast %c32_i32 : i32 to vector<256x128xi32>
    %15 = arith.cmpi slt, %13, %14 : vector<256x128xi32>
    %cst_7 = arith.constant 0.000000e+00 : f32
    %16 = vector.broadcast %cst_7 : f32 to vector<256x128xf32>
    %17 = arith.select %15, %12, %16 : vector<256x128xi1>, vector<256x128xf32>
    %18 = arith.mulf %17, %17 : vector<256x128xf32>
    %cst_8 = arith.constant dense<0.000000e+00> : vector<256xf32>
    %19 = vector.multi_reduction <add>, %18, %cst_8 [1] : vector<256x128xf32> to vector<256xf32>
    %20 = vector.shape_cast %19 : vector<256xf32> to vector<256x1xf32>
    %cst_9 = arith.constant 3.125000e-02 : f32
    %21 = vector.broadcast %cst_9 : f32 to vector<256x1xf32>
    %22 = arith.mulf %20, %21 : vector<256x1xf32>
    %cst_10 = arith.constant 9.99999974E-6 : f32
    %23 = vector.broadcast %cst_10 : f32 to vector<256x1xf32>
    %24 = arith.addf %22, %23 : vector<256x1xf32>
    %25 = math.rsqrt %24 : vector<256x1xf32>
    %c1 = arith.constant 1 : index
    %c0_11 = arith.constant 0 : index
    %26 = vector.load %arg6[%c1, %c0_11] : memref<8x128xf32, #tpu.memory_space<vmem>>, vector<1x128xf32>
    %27 = vector.broadcast %25 : vector<256x1xf32> to vector<256x128xf32>
    %28 = vector.broadcast %26 : vector<1x128xf32> to vector<256x128xf32>
    %29 = arith.mulf %27, %28 : vector<256x128xf32>
    %30 = arith.mulf %17, %29 : vector<256x128xf32>
    %c2 = arith.constant 2 : index
    %c0_12 = arith.constant 0 : index
    %31 = vector.load %arg6[%c2, %c0_12] : memref<8x128xf32, #tpu.memory_space<vmem>>, vector<1x128xf32>
    %32 = vector.broadcast %31 : vector<1x128xf32> to vector<256x128xf32>
    %33 = arith.addf %30, %32 : vector<256x128xf32>
    %34 = math.tanh %33 : vector<256x128xf32>
    %35 = arith.truncf %34 : vector<256x128xf32> to vector<256x128xbf16>
    %c0_13 = arith.constant 0 : index
    %c0_14 = arith.constant 0 : index
    %36 = vector.load %arg3[%c0_13, %c0_14] : memref<128x128xbf16, #tpu.memory_space<vmem>>, vector<128x128xbf16>
    %cst_15 = arith.constant dense<0.000000e+00> : vector<256x128xf32>
    %37 = tpu.matmul %35, %36, %cst_15 {dimension_numbers = #tpu.dot_dimension_numbers<[1], [0], [0], [1], [0, 0, 1, 1], [], []>} : vector<256x128xbf16>, vector<128x128xbf16>, vector<256x128xf32> -> vector<256x128xf32>
    %c3 = arith.constant 3 : index
    %c0_16 = arith.constant 0 : index
    %38 = vector.load %arg6[%c3, %c0_16] : memref<8x128xf32, #tpu.memory_space<vmem>>, vector<1x128xf32>
    %39 = vector.broadcast %38 : vector<1x128xf32> to vector<256x128xf32>
    %40 = arith.addf %37, %39 : vector<256x128xf32>
    %cst_17 = arith.constant 0.000000e+00 : f32
    %41 = vector.broadcast %cst_17 : f32 to vector<256x128xf32>
    %42 = arith.maximumf %40, %41 : vector<256x128xf32>
    %43 = arith.truncf %42 : vector<256x128xf32> to vector<256x128xbf16>
    %c0_18 = arith.constant 0 : index
    %c0_19 = arith.constant 0 : index
    %44 = vector.load %arg4[%c0_18, %c0_19] : memref<128x128xbf16, #tpu.memory_space<vmem>>, vector<128x128xbf16>
    %cst_20 = arith.constant dense<0.000000e+00> : vector<256x128xf32>
    %45 = tpu.matmul %43, %44, %cst_20 {dimension_numbers = #tpu.dot_dimension_numbers<[1], [0], [0], [1], [0, 0, 1, 1], [], []>} : vector<256x128xbf16>, vector<128x128xbf16>, vector<256x128xf32> -> vector<256x128xf32>
    %c4 = arith.constant 4 : index
    %c0_21 = arith.constant 0 : index
    %46 = vector.load %arg6[%c4, %c0_21] : memref<8x128xf32, #tpu.memory_space<vmem>>, vector<1x128xf32>
    %47 = vector.broadcast %46 : vector<1x128xf32> to vector<256x128xf32>
    %48 = arith.addf %45, %47 : vector<256x128xf32>
    %cst_22 = arith.constant 0.000000e+00 : f32
    %49 = vector.broadcast %cst_22 : f32 to vector<256x128xf32>
    %50 = arith.maximumf %48, %49 : vector<256x128xf32>
    %51 = arith.truncf %50 : vector<256x128xf32> to vector<256x128xbf16>
    %c0_23 = arith.constant 0 : index
    %c0_24 = arith.constant 0 : index
    %52 = vector.load %arg5[%c0_23, %c0_24] : memref<128x128xbf16, #tpu.memory_space<vmem>>, vector<128x128xbf16>
    %cst_25 = arith.constant dense<0.000000e+00> : vector<256x128xf32>
    %53 = tpu.matmul %51, %52, %cst_25 {dimension_numbers = #tpu.dot_dimension_numbers<[1], [0], [0], [1], [0, 0, 1, 1], [], []>} : vector<256x128xbf16>, vector<128x128xbf16>, vector<256x128xf32> -> vector<256x128xf32>
    %c5 = arith.constant 5 : index
    %c0_26 = arith.constant 0 : index
    %54 = vector.load %arg6[%c5, %c0_26] : memref<8x128xf32, #tpu.memory_space<vmem>>, vector<1x128xf32>
    %55 = vector.broadcast %54 : vector<1x128xf32> to vector<256x128xf32>
    %56 = arith.addf %53, %55 : vector<256x128xf32>
    %57 = arith.truncf %56 : vector<256x128xf32> to vector<256x128xbf16>
    %c0_27 = arith.constant 0 : index
    %c0_28 = arith.constant 0 : index
    %58 = vector.load %arg7[%c0_27, %c0_28] : memref<256x128xbf16, #tpu.memory_space<vmem>>, vector<256x128xbf16>
    tpu.vector_store %arg7[%c0_27, %c0_28], %57 {strides = array<i32>} : memref<256x128xbf16, #tpu.memory_space<vmem>>, vector<256x128xbf16>,
    return
  }
  func.func @transform_0(%arg0: i32) -> (i32, i32) {
    %c0_i32 = arith.constant 0 : i32
    %c0_i32_0 = arith.constant 0 : i32
    return %arg0, %c0_i32 : i32, i32
  }
  func.func @transform_1(%arg0: i32) -> (i32, i32) {
    %c0_i32 = arith.constant 0 : i32
    %c0_i32_0 = arith.constant 0 : i32
    %c0_i32_1 = arith.constant 0 : i32
    return %c0_i32, %c0_i32_0 : i32, i32
  }
  func.func @transform_2(%arg0: i32) -> (i32, i32) {
    %c0_i32 = arith.constant 0 : i32
    %c0_i32_0 = arith.constant 0 : i32
    %c0_i32_1 = arith.constant 0 : i32
    return %c0_i32, %c0_i32_0 : i32, i32
  }
  func.func @transform_3(%arg0: i32) -> (i32, i32) {
    %c0_i32 = arith.constant 0 : i32
    %c0_i32_0 = arith.constant 0 : i32
    %c0_i32_1 = arith.constant 0 : i32
    return %c0_i32, %c0_i32_0 : i32, i32
  }
  func.func @transform_4(%arg0: i32) -> (i32, i32) {
    %c0_i32 = arith.constant 0 : i32
    %c0_i32_0 = arith.constant 0 : i32
    %c0_i32_1 = arith.constant 0 : i32
    return %c0_i32, %c0_i32_0 : i32, i32
  }
  func.func @transform_5(%arg0: i32) -> (i32, i32) {
    %c0_i32 = arith.constant 0 : i32
    %c0_i32_0 = arith.constant 0 : i32
    %c0_i32_1 = arith.constant 0 : i32
    return %c0_i32, %c0_i32_0 : i32, i32
  }
  func.func @transform_6(%arg0: i32) -> (i32, i32) {
    %c0_i32 = arith.constant 0 : i32
    %c0_i32_0 = arith.constant 0 : i32
    return %arg0, %c0_i32 : i32, i32
  }
}

</mosaic_0001>

<llo_original>
// kernel: tpu_custom_call.1
$region0: #{tpu_custom_call.1}
  #allocation0 [shape = 'u32[]', space=smem, size = 0x4, offset = 0x4, fixed_abs, tag = 'smem constant byte address 0x4 - core index']
  #allocation1 [shape = 'u32[144,128]{1,0:T(1,128)}', space=vmem, size = 0x12000, scoped, tag = 'internal scratch']
  %s0 = inlined_call_operand.vmem [shape: f32[256,64], index: 0, kind: input, shape index: {}]
  %s1 = inlined_call_operand.vmem [shape: bf16[64,128], index: 1, kind: input, shape index: {}]
  %s2 = inlined_call_operand.vmem [shape: bf16[128,128], index: 2, kind: input, shape index: {}]
  %s3 = inlined_call_operand.vmem [shape: bf16[128,128], index: 3, kind: input, shape index: {}]
  %s4 = inlined_call_operand.vmem [shape: bf16[128,128], index: 4, kind: input, shape index: {}]
  %s5 = inlined_call_operand.vmem [shape: f32[8,128], index: 5, kind: input, shape index: {}]
  %s6 = inlined_call_operand.hbm [shape: bf16[256,128], index: 6, kind: output, shape index: {}]
  %s7 = sld [smem:[#allocation0]]
  $region34: #{tpu_custom_call.1} parent=0
    _
  %s9 = ssub.s32 1, %s7
  %s10 = scalar_select 0, %s9, %s7
  $region1: #{tpu_custom_call.1} parent=0
    #allocation2 [shape = 'u8[65536]{0}', space=vmem, size = 0x10000, scoped, tag = 'output window, operand 0, single buffered']
    #allocation3 [shape = 's32[1]{0}', space=sflag, size = 0x4, scoped, tag = 'scoped memory for tpu_custom_call.1']
    %11 = vsyncpa [#allocation3], 0
    // Predicated region
    $region2: #{tpu_custom_call.1} parent=1 // pred_check
      _
    $region3: #{tpu_custom_call.1} parent=1 // pred_check_branch
      %13 = sbr.rel (0) target = $region5
    $region4: #{tpu_custom_call.1} parent=1 // pred_region
      _
    $region5: #{tpu_custom_call.1} parent=1 // pred_fallthru
      _
    // Predicated region
    $region6: #{tpu_custom_call.1} parent=1 // pred_check
      _
    $region7: #{tpu_custom_call.1} parent=1 // pred_check_branch
      %15 = sbr.rel (0) target = $region9
    $region8: #{tpu_custom_call.1} parent=1 // pred_region
      _
    $region9: #{tpu_custom_call.1} parent=1 // pred_fallthru
      _
    // Predicated region
    $region10: #{tpu_custom_call.1} parent=1 // pred_check
      _
    $region11: #{tpu_custom_call.1} parent=1 // pred_check_branch
      %17 = sbr.rel (0) target = $region13
    $region12: #{tpu_custom_call.1} parent=1 // pred_region
      _
    $region13: #{tpu_custom_call.1} parent=1 // pred_fallthru
      _
    // Predicated region
    $region14: #{tpu_custom_call.1} parent=1 // pred_check
      _
    $region15: #{tpu_custom_call.1} parent=1 // pred_check_branch
      %19 = sbr.rel (0) target = $region17
    $region16: #{tpu_custom_call.1} parent=1 // pred_region
      _
    $region17: #{tpu_custom_call.1} parent=1 // pred_fallthru
      _
    // Predicated region
    $region18: #{tpu_custom_call.1} parent=1 // pred_check
      _
    $region19: #{tpu_custom_call.1} parent=1 // pred_check_branch
      %21 = sbr.rel (0) target = $region21
    $region20: #{tpu_custom_call.1} parent=1 // pred_region
      _
    $region21: #{tpu_custom_call.1} parent=1 // pred_fallthru
      _
    // Predicated region
    $region22: #{tpu_custom_call.1} parent=1 // pred_check
      _
    $region23: #{tpu_custom_call.1} parent=1 // pred_check_branch
      %23 = sbr.rel (0) target = $region25
    $region24: #{tpu_custom_call.1} parent=1 // pred_region
      _
    $region25: #{tpu_custom_call.1} parent=1 // pred_fallthru
      _
    %v25 = vld [vmem:[%s0] sm:$0xff]
    %v26 = vld [vmem:[%s0 + $0x8] sm:$0xff]
    %v27 = vld [vmem:[%s0 + $0x10] sm:$0xff]
    %v28 = vld [vmem:[%s0 + $0x18] sm:$0xff]
    %v29 = vld [vmem:[%s0 + $0x20] sm:$0xff]
    %v30 = vld [vmem:[%s0 + $0x28] sm:$0xff]
    %v31 = vld [vmem:[%s0 + $0x30] sm:$0xff]
    %v32 = vld [vmem:[%s0 + $0x38] sm:$0xff]
    %v33 = vld [vmem:[%s0 + $0x40] sm:$0xff]
    %v34 = vld [vmem:[%s0 + $0x48] sm:$0xff]
    %v35 = vld [vmem:[%s0 + $0x50] sm:$0xff]
    %v36 = vld [vmem:[%s0 + $0x58] sm:$0xff]
    %v37 = vld [vmem:[%s0 + $0x60] sm:$0xff]
    %v38 = vld [vmem:[%s0 + $0x68] sm:$0xff]
    %v39 = vld [vmem:[%s0 + $0x70] sm:$0xff]
    %v40 = vld [vmem:[%s0 + $0x78] sm:$0xff]
    %v41 = vld [vmem:[%s0 + $0x80] sm:$0xff]
    %v42 = vld [vmem:[%s0 + $0x88] sm:$0xff]
    %v43 = vld [vmem:[%s0 + $0x90] sm:$0xff]
    %v44 = vld [vmem:[%s0 + $0x98] sm:$0xff]
    %v45 = vld [vmem:[%s0 + $0xa0] sm:$0xff]
    %v46 = vld [vmem:[%s0 + $0xa8] sm:$0xff]
    %v47 = vld [vmem:[%s0 + $0xb0] sm:$0xff]
    %v48 = vld [vmem:[%s0 + $0xb8] sm:$0xff]
    %v49 = vld [vmem:[%s0 + $0xc0] sm:$0xff]
    %v50 = vld [vmem:[%s0 + $0xc8] sm:$0xff]
    %v51 = vld [vmem:[%s0 + $0xd0] sm:$0xff]
    %v52 = vld [vmem:[%s0 + $0xd8] sm:$0xff]
    %v53 = vld [vmem:[%s0 + $0xe0] sm:$0xff]
    %v54 = vld [vmem:[%s0 + $0xe8] sm:$0xff]
    %v55 = vld [vmem:[%s0 + $0xf0] sm:$0xff]
    %v56 = vld [vmem:[%s0 + $0xf8] sm:$0xff]
    %v57 = vpack.c.bf16 %v26, %v25
    %v58 = vpack.c.bf16 %v28, %v27
    %v59 = vpack.c.bf16 %v30, %v29
    %v60 = vpack.c.bf16 %v32, %v31
    %v61 = vpack.c.bf16 %v34, %v33
    %v62 = vpack.c.bf16 %v36, %v35
    %v63 = vpack.c.bf16 %v38, %v37
    %v64 = vpack.c.bf16 %v40, %v39
    %v65 = vpack.c.bf16 %v42, %v41
    %v66 = vpack.c.bf16 %v44, %v43
    %v67 = vpack.c.bf16 %v46, %v45
    %v68 = vpack.c.bf16 %v48, %v47
    %v69 = vpack.c.bf16 %v50, %v49
    %v70 = vpack.c.bf16 %v52, %v51
    %v71 = vpack.c.bf16 %v54, %v53
    %v72 = vpack.c.bf16 %v56, %v55
    %v73 = vld [vmem:[%s1] sm:$0xf]
    %v74 = vld [vmem:[%s1 + $0x4] sm:$0xf]
    %v75 = vld [vmem:[%s1 + $0x8] sm:$0xf]
    %v76 = vld [vmem:[%s1 + $0xc] sm:$0xf]
    %v77 = vld [vmem:[%s1 + $0x10] sm:$0xf]
    %v78 = vld [vmem:[%s1 + $0x14] sm:$0xf]
    %v79 = vld [vmem:[%s1 + $0x18] sm:$0xf]
    %v80 = vld [vmem:[%s1 + $0x1c] sm:$0xf]
    %v81 = vld [vmem:[%s5] sm:$0x1]
    %v82 = vlaneseq
    %v83 = vshrl.u32 %v82, 7
    %v84 = vsub.s32 0, %v83
    %v85 = vrot.slane %v81, %v84
    %v94 = vunpack.c.l.b16 %v73
    %v95 = vunpack.c.l.b16 %v74
    %v96 = vunpack.c.l.b16 %v75
    %v97 = vunpack.c.l.b16 %v76
    %v98 = vunpack.c.l.b16 %v77
    %v99 = vunpack.c.l.b16 %v78
    %v100 = vunpack.c.l.b16 %v79
    %v101 = vunpack.c.l.b16 %v80
    %v102 = vpack.c.b16 %v95, %v94
    %v103 = vpack.c.b16 %v97, %v96
    %v104 = vpack.c.b16 %v99, %v98
    %v105 = vpack.c.b16 %v101, %v100
    %vm110 = vcmask 523264
    %v112 = vsel %vm110, %v57, 0
    %v115 = vsel %vm110, %v58, 0
    %v118 = vsel %vm110, %v59, 0
    %v121 = vsel %vm110, %v60, 0
    %v124 = vsel %vm110, %v61, 0
    %v127 = vsel %vm110, %v62, 0
    %v130 = vsel %vm110, %v63, 0
    %v133 = vsel %vm110, %v64, 0
    %v136 = vsel %vm110, %v65, 0
    %v139 = vsel %vm110, %v66, 0
    %v142 = vsel %vm110, %v67, 0
    %v145 = vsel %vm110, %v68, 0
    %v148 = vsel %vm110, %v69, 0
    %v151 = vsel %vm110, %v70, 0
    %v154 = vsel %vm110, %v71, 0
    %v157 = vsel %vm110, %v72, 0
    %159 = vmatprep.subr.bf16.mxu0 0
    %160 = vmatpush1.bf16.msra.mxu0 0
    %161 = vmatprep.subr.bf16.mxu0 0
    %162 = vmatpush1.bf16.msra.mxu0 0
    %163 = vmatprep.subr.bf16.mxu0 0
    %164 = vmatpush1.bf16.msra.mxu0 0
    %165 = vmatprep.subr.bf16.mxu0 0
    %166 = vmatpush1.bf16.msra.mxu0 0
    %167 = vmatprep.subr.bf16.mxu0 0
    %168 = vmatpush1.bf16.msra.mxu0 %v105
    %169 = vmatprep.subr.bf16.mxu0 0
    %170 = vmatpush1.bf16.msra.mxu0 %v104
    %171 = vmatprep.subr.bf16.mxu0 0
    %172 = vmatpush1.bf16.msra.mxu0 %v103
    %173 = vmatprep.subr.bf16.mxu0 0
    %174 = vmatpush1.bf16.msra.mxu0 %v102
    %175 = vmatprep.subr.bf16.mxu0 0
    %176 = vmatpush2.bf16.msra.mxu0 0
    %177 = vmatprep.subr.bf16.mxu0 0
    %178 = vmatpush2.bf16.msra.mxu0 0
    %179 = vmatprep.subr.bf16.mxu0 0
    %180 = vmatpush2.bf16.msra.mxu0 0
    %181 = vmatprep.subr.bf16.mxu0 0
    %182 = vmatpush2.bf16.msra.mxu0 0
    %183 = vmatprep.subr.bf16.mxu0 0
    %184 = vmatpush2.bf16.msra.mxu0 0
    %185 = vmatprep.subr.bf16.mxu0 0
    %186 = vmatpush2.bf16.msra.mxu0 0
    %187 = vmatprep.subr.bf16.mxu0 0
    %188 = vmatpush2.bf16.msra.mxu0 0
    %189 = vmatprep.subr.bf16.mxu0 0
    %190 = vmatpush2.bf16.msra.mxu0 0
    %191 = vmatprep.mubr.bf16.mxu0 0
    %192 = vmatmul.mubr.bf16.gmra.mxu0 %v112
    %v193 = vpop.f32.mrf.mxu0
    %v194 = vadd.f32 %v85, %v193
    %v195 = vpop.f32.mrf.mxu0
    %v196 = vpop.f32.mrf.mxu0
    %v197 = vadd.f32 %v85, %v196
    %v198 = vpop.f32.mrf.mxu0
    %199 = vmatprep.mubr.bf16.mxu0 0
    %200 = vmatmul.mubr.bf16.gmra.mxu0 %v115
    %v201 = vpop.f32.mrf.mxu0
    %v202 = vadd.f32 %v85, %v201
    %v203 = vpop.f32.mrf.mxu0
    %v204 = vpop.f32.mrf.mxu0
    %v205 = vadd.f32 %v85, %v204
    %v206 = vpop.f32.mrf.mxu0
    %207 = vmatprep.mubr.bf16.mxu0 0
    %208 = vmatmul.mubr.bf16.gmra.mxu0 %v118
    %v209 = vpop.f32.mrf.mxu0
    %v210 = vadd.f32 %v85, %v209
    %v211 = vpop.f32.mrf.mxu0
    %v212 = vpop.f32.mrf.mxu0
    %v213 = vadd.f32 %v85, %v212
    %v214 = vpop.f32.mrf.mxu0
    %215 = vmatprep.mubr.bf16.mxu0 0
    %216 = vmatmul.mubr.bf16.gmra.mxu0 %v121
    %v217 = vpop.f32.mrf.mxu0
    %v218 = vadd.f32 %v85, %v217
    %v219 = vpop.f32.mrf.mxu0
    %v220 = vpop.f32.mrf.mxu0
    %v221 = vadd.f32 %v85, %v220
    %v222 = vpop.f32.mrf.mxu0
    %223 = vmatprep.mubr.bf16.mxu0 0
    %224 = vmatmul.mubr.bf16.gmra.mxu0 %v124
    %v225 = vpop.f32.mrf.mxu0
    %v226 = vadd.f32 %v85, %v225
    %v227 = vpop.f32.mrf.mxu0
    %v228 = vpop.f32.mrf.mxu0
    %v229 = vadd.f32 %v85, %v228
    %v230 = vpop.f32.mrf.mxu0
    %231 = vmatprep.mubr.bf16.mxu0 0
    %232 = vmatmul.mubr.bf16.gmra.mxu0 %v127
    %v233 = vpop.f32.mrf.mxu0
    %v234 = vadd.f32 %v85, %v233
    %v235 = vpop.f32.mrf.mxu0
    %v236 = vpop.f32.mrf.mxu0
    %v237 = vadd.f32 %v85, %v236
    %v238 = vpop.f32.mrf.mxu0
    %239 = vmatprep.mubr.bf16.mxu0 0
    %240 = vmatmul.mubr.bf16.gmra.mxu0 %v130
    %v241 = vpop.f32.mrf.mxu0
    %v242 = vadd.f32 %v85, %v241
    %v243 = vpop.f32.mrf.mxu0
    %v244 = vpop.f32.mrf.mxu0
    %v245 = vadd.f32 %v85, %v244
    %v246 = vpop.f32.mrf.mxu0
    %247 = vmatprep.mubr.bf16.mxu0 0
    %248 = vmatmul.mubr.bf16.gmra.mxu0 %v133
    %v249 = vpop.f32.mrf.mxu0
    %v250 = vadd.f32 %v85, %v249
    %v251 = vpop.f32.mrf.mxu0
    %v252 = vpop.f32.mrf.mxu0
    %v253 = vadd.f32 %v85, %v252
    %v254 = vpop.f32.mrf.mxu0
    %255 = vmatprep.mubr.bf16.mxu0 0
    %256 = vmatmul.mubr.bf16.gmra.mxu0 %v136
    %v257 = vpop.f32.mrf.mxu0
    %v258 = vadd.f32 %v85, %v257
    %v259 = vpop.f32.mrf.mxu0
    %v260 = vpop.f32.mrf.mxu0
    %v261 = vadd.f32 %v85, %v260
    %v262 = vpop.f32.mrf.mxu0
    %263 = vmatprep.mubr.bf16.mxu0 0
    %264 = vmatmul.mubr.bf16.gmra.mxu0 %v139
    %v265 = vpop.f32.mrf.mxu0
    %v266 = vadd.f32 %v85, %v265
    %v267 = vpop.f32.mrf.mxu0
    %v268 = vpop.f32.mrf.mxu0
    %v269 = vadd.f32 %v85, %v268
    %v270 = vpop.f32.mrf.mxu0
    %271 = vmatprep.mubr.bf16.mxu0 0
    %272 = vmatmul.mubr.bf16.gmra.mxu0 %v142
    %v273 = vpop.f32.mrf.mxu0
    %v274 = vadd.f32 %v85, %v273
    %v275 = vpop.f32.mrf.mxu0
    %v276 = vpop.f32.mrf.mxu0
    %v277 = vadd.f32 %v85, %v276
    %v278 = vpop.f32.mrf.mxu0
    %279 = vmatprep.mubr.bf16.mxu0 0
    %280 = vmatmul.mubr.bf16.gmra.mxu0 %v145
    %v281 = vpop.f32.mrf.mxu0
    %v282 = vadd.f32 %v85, %v281
    %v283 = vpop.f32.mrf.mxu0
    %v284 = vpop.f32.mrf.mxu0
    %v285 = vadd.f32 %v85, %v284
    %v286 = vpop.f32.mrf.mxu0
    %287 = vmatprep.mubr.bf16.mxu0 0
    %288 = vmatmul.mubr.bf16.gmra.mxu0 %v148
    %v289 = vpop.f32.mrf.mxu0
    %v290 = vadd.f32 %v85, %v289
    %v291 = vpop.f32.mrf.mxu0
    %v292 = vpop.f32.mrf.mxu0
    %v293 = vadd.f32 %v85, %v292
    %v294 = vpop.f32.mrf.mxu0
    %295 = vmatprep.mubr.bf16.mxu0 0
    %296 = vmatmul.mubr.bf16.gmra.mxu0 %v151
    %v297 = vpop.f32.mrf.mxu0
    %v298 = vadd.f32 %v85, %v297
    %v299 = vpop.f32.mrf.mxu0
    %v300 = vpop.f32.mrf.mxu0
    %v301 = vadd.f32 %v85, %v300
    %v302 = vpop.f32.mrf.mxu0
    %303 = vmatprep.mubr.bf16.mxu0 0
    %304 = vmatmul.mubr.bf16.gmra.mxu0 %v154
    %v305 = vpop.f32.mrf.mxu0
    %v306 = vadd.f32 %v85, %v305
    %v307 = vpop.f32.mrf.mxu0
    %v308 = vpop.f32.mrf.mxu0
    %v309 = vadd.f32 %v85, %v308
    %v310 = vpop.f32.mrf.mxu0
    %311 = vmatprep.mubr.bf16.mxu0 0
    %312 = vmatmul.mubr.bf16.gmra.mxu0 %v157
    %v313 = vpop.f32.mrf.mxu0
    %v314 = vadd.f32 %v85, %v313
    %v315 = vpop.f32.mrf.mxu0
    %v316 = vpop.f32.mrf.mxu0
    %v317 = vadd.f32 %v85, %v316
    %v318 = vpop.f32.mrf.mxu0
    %319 = vdwg.mxu0
    %320 = vadd.xlane.f32.xlu0 %v194
    %v321 = vpop.xlane.xlu0 %320
    %322 = vadd.xlane.f32.xlu0 %v197
    %v323 = vpop.xlane.xlu0 %322
    %324 = vadd.xlane.f32.xlu0 %v202
    %v325 = vpop.xlane.xlu0 %324
    %326 = vadd.xlane.f32.xlu0 %v205
    %v327 = vpop.xlane.xlu0 %326
    %328 = vadd.xlane.f32.xlu0 %v210
    %v329 = vpop.xlane.xlu0 %328
    %330 = vadd.xlane.f32.xlu0 %v213
    %v331 = vpop.xlane.xlu0 %330
    %332 = vadd.xlane.f32.xlu0 %v218
    %v333 = vpop.xlane.xlu0 %332
    %334 = vadd.xlane.f32.xlu0 %v221
    %v335 = vpop.xlane.xlu0 %334
    %336 = vadd.xlane.f32.xlu0 %v226
    %v337 = vpop.xlane.xlu0 %336
    %338 = vadd.xlane.f32.xlu0 %v229
    %v339 = vpop.xlane.xlu0 %338
    %340 = vadd.xlane.f32.xlu0 %v234
    %v341 = vpop.xlane.xlu0 %340
    %342 = vadd.xlane.f32.xlu0 %v237
    %v343 = vpop.xlane.xlu0 %342
    %344 = vadd.xlane.f32.xlu0 %v242
    %v345 = vpop.xlane.xlu0 %344
    %346 = vadd.xlane.f32.xlu0 %v245
    %v347 = vpop.xlane.xlu0 %346
    %348 = vadd.xlane.f32.xlu0 %v250
    %v349 = vpop.xlane.xlu0 %348
    %350 = vadd.xlane.f32.xlu0 %v253
    %v351 = vpop.xlane.xlu0 %350
    %352 = vadd.xlane.f32.xlu0 %v258
    %v353 = vpop.xlane.xlu0 %352
    %354 = vadd.xlane.f32.xlu0 %v261
    %v355 = vpop.xlane.xlu0 %354
    %356 = vadd.xlane.f32.xlu0 %v266
    %v357 = vpop.xlane.xlu0 %356
    %358 = vadd.xlane.f32.xlu0 %v269
    %v359 = vpop.xlane.xlu0 %358
    %360 = vadd.xlane.f32.xlu0 %v274
    %v361 = vpop.xlane.xlu0 %360
    %362 = vadd.xlane.f32.xlu0 %v277
    %v363 = vpop.xlane.xlu0 %362
    %364 = vadd.xlane.f32.xlu0 %v282
    %v365 = vpop.xlane.xlu0 %364
    %366 = vadd.xlane.f32.xlu0 %v285
    %v367 = vpop.xlane.xlu0 %366
    %368 = vadd.xlane.f32.xlu0 %v290
    %v369 = vpop.xlane.xlu0 %368
    %370 = vadd.xlane.f32.xlu0 %v293
    %v371 = vpop.xlane.xlu0 %370
    %372 = vadd.xlane.f32.xlu0 %v298
    %v373 = vpop.xlane.xlu0 %372
    %374 = vadd.xlane.f32.xlu0 %v301
    %v375 = vpop.xlane.xlu0 %374
    %376 = vadd.xlane.f32.xlu0 %v306
    %v377 = vpop.xlane.xlu0 %376
    %378 = vadd.xlane.f32.xlu0 %v309
    %v379 = vpop.xlane.xlu0 %378
    %380 = vadd.xlane.f32.xlu0 %v314
    %v381 = vpop.xlane.xlu0 %380
    %382 = vadd.xlane.f32.xlu0 %v317
    %v383 = vpop.xlane.xlu0 %382
    %v384 = vmul.f32 %v321, 0.03125
    %v385 = vmul.f32 %v323, 0.03125
    %v386 = vmul.f32 %v325, 0.03125
    %v387 = vmul.f32 %v327, 0.03125
    %v388 = vmul.f32 %v329, 0.03125
    %v389 = vmul.f32 %v331, 0.03125
    %v390 = vmul.f32 %v333, 0.03125
    %v391 = vmul.f32 %v335, 0.03125
    %v392 = vmul.f32 %v337, 0.03125
    %v393 = vmul.f32 %v339, 0.03125
    %v394 = vmul.f32 %v341, 0.03125
    %v395 = vmul.f32 %v343, 0.03125
    %v396 = vmul.f32 %v345, 0.03125
    %v397 = vmul.f32 %v347, 0.03125
    %v398 = vmul.f32 %v349, 0.03125
    %v399 = vmul.f32 %v351, 0.03125
    %v400 = vmul.f32 %v353, 0.03125
    %v401 = vmul.f32 %v355, 0.03125
    %v402 = vmul.f32 %v357, 0.03125
    %v403 = vmul.f32 %v359, 0.03125
    %v404 = vmul.f32 %v361, 0.03125
    %v405 = vmul.f32 %v363, 0.03125
    %v406 = vmul.f32 %v365, 0.03125
    %v407 = vmul.f32 %v367, 0.03125
    %v408 = vmul.f32 %v369, 0.03125
    %v409 = vmul.f32 %v371, 0.03125
    %v410 = vmul.f32 %v373, 0.03125
    %v411 = vmul.f32 %v375, 0.03125
    %v412 = vmul.f32 %v377, 0.03125
    %v413 = vmul.f32 %v379, 0.03125
    %v414 = vmul.f32 %v381, 0.03125
    %v415 = vmul.f32 %v383, 0.03125
    %v416 = vsub.f32 %v194, %v384
    %v417 = vsub.f32 %v197, %v385
    %v418 = vsub.f32 %v202, %v386
    %v419 = vsub.f32 %v205, %v387
    %v420 = vsub.f32 %v210, %v388
    %v421 = vsub.f32 %v213, %v389
    %v422 = vsub.f32 %v218, %v390
    %v423 = vsub.f32 %v221, %v391
    %v424 = vsub.f32 %v226, %v392
    %v425 = vsub.f32 %v229, %v393
    %v426 = vsub.f32 %v234, %v394
    %v427 = vsub.f32 %v237, %v395
    %v428 = vsub.f32 %v242, %v396
    %v429 = vsub.f32 %v245, %v397
    %v430 = vsub.f32 %v250, %v398
    %v431 = vsub.f32 %v253, %v399
    %v432 = vsub.f32 %v258, %v400
    %v433 = vsub.f32 %v261, %v401
    %v434 = vsub.f32 %v266, %v402
    %v435 = vsub.f32 %v269, %v403
    %v436 = vsub.f32 %v274, %v404
    %v437 = vsub.f32 %v277, %v405
    %v438 = vsub.f32 %v282, %v406
    %v439 = vsub.f32 %v285, %v407
    %v440 = vsub.f32 %v290, %v408
    %v441 = vsub.f32 %v293, %v409
    %v442 = vsub.f32 %v298, %v410
    %v443 = vsub.f32 %v301, %v411
    %v444 = vsub.f32 %v306, %v412
    %v445 = vsub.f32 %v309, %v413
    %v446 = vsub.f32 %v314, %v414
    %v447 = vsub.f32 %v317, %v415
    %v448 = vlaneseq
    %v449 = vand.u32 %v448, 127
    %vm450 = vcmp.lt.s32.totalorder %v449, 32
    %v451 = vsel %vm450, %v416, 0.0
    %v452 = vsel %vm450, %v417, 0.0
    %v453 = vsel %vm450, %v418, 0.0
    %v454 = vsel %vm450, %v419, 0.0
    %v455 = vsel %vm450, %v420, 0.0
    %v456 = vsel %vm450, %v421, 0.0
    %v457 = vsel %vm450, %v422, 0.0
    %v458 = vsel %vm450, %v423, 0.0
    %v459 = vsel %vm450, %v424, 0.0
    %v460 = vsel %vm450, %v425, 0.0
    %v461 = vsel %vm450, %v426, 0.0
    %v462 = vsel %vm450, %v427, 0.0
    %v463 = vsel %vm450, %v428, 0.0
    %v464 = vsel %vm450, %v429, 0.0
    %v465 = vsel %vm450, %v430, 0.0
    %v466 = vsel %vm450, %v431, 0.0
    %v467 = vsel %vm450, %v432, 0.0
    %v468 = vsel %vm450, %v433, 0.0
    %v469 = vsel %vm450, %v434, 0.0
    %v470 = vsel %vm450, %v435, 0.0
    %v471 = vsel %vm450, %v436, 0.0
    %v472 = vsel %vm450, %v437, 0.0
    %v473 = vsel %vm450, %v438, 0.0
    %v474 = vsel %vm450, %v439, 0.0
    %v475 = vsel %vm450, %v440, 0.0
    %v476 = vsel %vm450, %v441, 0.0
    %v477 = vsel %vm450, %v442, 0.0
    %v478 = vsel %vm450, %v443, 0.0
    %v479 = vsel %vm450, %v444, 0.0
    %v480 = vsel %vm450, %v445, 0.0
    %v481 = vsel %vm450, %v446, 0.0
    %v482 = vsel %vm450, %v447, 0.0
    %v483 = vmul.f32 %v451, %v451
    %v484 = vmul.f32 %v452, %v452
    %v485 = vmul.f32 %v453, %v453
    %v486 = vmul.f32 %v454, %v454
    %v487 = vmul.f32 %v455, %v455
    %v488 = vmul.f32 %v456, %v456
    %v489 = vmul.f32 %v457, %v457
    %v490 = vmul.f32 %v458, %v458
    %v491 = vmul.f32 %v459, %v459
    %v492 = vmul.f32 %v460, %v460
    %v493 = vmul.f32 %v461, %v461
    %v494 = vmul.f32 %v462, %v462
    %v495 = vmul.f32 %v463, %v463
    %v496 = vmul.f32 %v464, %v464
    %v497 = vmul.f32 %v465, %v465
    %v498 = vmul.f32 %v466, %v466
    %v499 = vmul.f32 %v467, %v467
    %v500 = vmul.f32 %v468, %v468
    %v501 = vmul.f32 %v469, %v469
    %v502 = vmul.f32 %v470, %v470
    %v503 = vmul.f32 %v471, %v471
    %v504 = vmul.f32 %v472, %v472
    %v505 = vmul.f32 %v473, %v473
    %v506 = vmul.f32 %v474, %v474
    %v507 = vmul.f32 %v475, %v475
    %v508 = vmul.f32 %v476, %v476
    %v509 = vmul.f32 %v477, %v477
    %v510 = vmul.f32 %v478, %v478
    %v511 = vmul.f32 %v479, %v479
    %v512 = vmul.f32 %v480, %v480
    %v513 = vmul.f32 %v481, %v481
    %v514 = vmul.f32 %v482, %v482
    %515 = vadd.xlane.f32.xlu0 %v483
    %v516 = vpop.xlane.xlu0 %515
    %517 = vadd.xlane.f32.xlu0 %v484
    %v518 = vpop.xlane.xlu0 %517
    %519 = vadd.xlane.f32.xlu0 %v485
    %v520 = vpop.xlane.xlu0 %519
    %521 = vadd.xlane.f32.xlu0 %v486
    %v522 = vpop.xlane.xlu0 %521
    %523 = vadd.xlane.f32.xlu0 %v487
    %v524 = vpop.xlane.xlu0 %523
    %525 = vadd.xlane.f32.xlu0 %v488
    %v526 = vpop.xlane.xlu0 %525
    %527 = vadd.xlane.f32.xlu0 %v489
    %v528 = vpop.xlane.xlu0 %527
    %529 = vadd.xlane.f32.xlu0 %v490
    %v530 = vpop.xlane.xlu0 %529
    %531 = vadd.xlane.f32.xlu0 %v491
    %v532 = vpop.xlane.xlu0 %531
    %533 = vadd.xlane.f32.xlu0 %v492
    %v534 = vpop.xlane.xlu0 %533
    %535 = vadd.xlane.f32.xlu0 %v493
    %v536 = vpop.xlane.xlu0 %535
    %537 = vadd.xlane.f32.xlu0 %v494
    %v538 = vpop.xlane.xlu0 %537
    %539 = vadd.xlane.f32.xlu0 %v495
    %v540 = vpop.xlane.xlu0 %539
    %541 = vadd.xlane.f32.xlu0 %v496
    %v542 = vpop.xlane.xlu0 %541
    %543 = vadd.xlane.f32.xlu0 %v497
    %v544 = vpop.xlane.xlu0 %543
    %545 = vadd.xlane.f32.xlu0 %v498
    %v546 = vpop.xlane.xlu0 %545
    %547 = vadd.xlane.f32.xlu0 %v499
    %v548 = vpop.xlane.xlu0 %547
    %549 = vadd.xlane.f32.xlu0 %v500
    %v550 = vpop.xlane.xlu0 %549
    %551 = vadd.xlane.f32.xlu0 %v501
    %v552 = vpop.xlane.xlu0 %551
    %553 = vadd.xlane.f32.xlu0 %v502
    %v554 = vpop.xlane.xlu0 %553
    %555 = vadd.xlane.f32.xlu0 %v503
    %v556 = vpop.xlane.xlu0 %555
    %557 = vadd.xlane.f32.xlu0 %v504
    %v558 = vpop.xlane.xlu0 %557
    %559 = vadd.xlane.f32.xlu0 %v505
    %v560 = vpop.xlane.xlu0 %559
    %561 = vadd.xlane.f32.xlu0 %v506
    %v562 = vpop.xlane.xlu0 %561
    %563 = vadd.xlane.f32.xlu0 %v507
    %v564 = vpop.xlane.xlu0 %563
    %565 = vadd.xlane.f32.xlu0 %v508
    %v566 = vpop.xlane.xlu0 %565
    %567 = vadd.xlane.f32.xlu0 %v509
    %v568 = vpop.xlane.xlu0 %567
    %569 = vadd.xlane.f32.xlu0 %v510
    %v570 = vpop.xlane.xlu0 %569
    %571 = vadd.xlane.f32.xlu0 %v511
    %v572 = vpop.xlane.xlu0 %571
    %573 = vadd.xlane.f32.xlu0 %v512
    %v574 = vpop.xlane.xlu0 %573
    %575 = vadd.xlane.f32.xlu0 %v513
    %v576 = vpop.xlane.xlu0 %575
    %577 = vadd.xlane.f32.xlu0 %v514
    %v578 = vpop.xlane.xlu0 %577
    %v579 = vmul.f32 %v516, 0.03125
    %v580 = vmul.f32 %v518, 0.03125
    %v581 = vmul.f32 %v520, 0.03125
    %v582 = vmul.f32 %v522, 0.03125
    %v583 = vmul.f32 %v524, 0.03125
    %v584 = vmul.f32 %v526, 0.03125
    %v585 = vmul.f32 %v528, 0.03125
    %v586 = vmul.f32 %v530, 0.03125
    %v587 = vmul.f32 %v532, 0.03125
    %v588 = vmul.f32 %v534, 0.03125
    %v589 = vmul.f32 %v536, 0.03125
    %v590 = vmul.f32 %v538, 0.03125
    %v591 = vmul.f32 %v540, 0.03125
    %v592 = vmul.f32 %v542, 0.03125
    %v593 = vmul.f32 %v544, 0.03125
    %v594 = vmul.f32 %v546, 0.03125
    %v595 = vmul.f32 %v548, 0.03125
    %v596 = vmul.f32 %v550, 0.03125
    %v597 = vmul.f32 %v552, 0.03125
    %v598 = vmul.f32 %v554, 0.03125
    %v599 = vmul.f32 %v556, 0.03125
    %v600 = vmul.f32 %v558, 0.03125
    %v601 = vmul.f32 %v560, 0.03125
    %v602 = vmul.f32 %v562, 0.03125
    %v603 = vmul.f32 %v564, 0.03125
    %v604 = vmul.f32 %v566, 0.03125
    %v605 = vmul.f32 %v568, 0.03125
    %v606 = vmul.f32 %v570, 0.03125
    %v607 = vmul.f32 %v572, 0.03125
    %v608 = vmul.f32 %v574, 0.03125
    %v609 = vmul.f32 %v576, 0.03125
    %v610 = vmul.f32 %v578, 0.03125
    %v611 = vadd.f32 %v579, 1e-05
    %v612 = vadd.f32 %v580, 1e-05
    %v613 = vadd.f32 %v581, 1e-05
    %v614 = vadd.f32 %v582, 1e-05
    %v615 = vadd.f32 %v583, 1e-05
    %v616 = vadd.f32 %v584, 1e-05
    %v617 = vadd.f32 %v585, 1e-05
    %v618 = vadd.f32 %v586, 1e-05
    %v619 = vadd.f32 %v587, 1e-05
    %v620 = vadd.f32 %v588, 1e-05
    %v621 = vadd.f32 %v589, 1e-05
    %v622 = vadd.f32 %v590, 1e-05
    %v623 = vadd.f32 %v591, 1e-05
    %v624 = vadd.f32 %v592, 1e-05
    %v625 = vadd.f32 %v593, 1e-05
    %v626 = vadd.f32 %v594, 1e-05
    %v627 = vadd.f32 %v595, 1e-05
    %v628 = vadd.f32 %v596, 1e-05
    %v629 = vadd.f32 %v597, 1e-05
    %v630 = vadd.f32 %v598, 1e-05
    %v631 = vadd.f32 %v599, 1e-05
    %v632 = vadd.f32 %v600, 1e-05
    %v633 = vadd.f32 %v601, 1e-05
    %v634 = vadd.f32 %v602, 1e-05
    %v635 = vadd.f32 %v603, 1e-05
    %v636 = vadd.f32 %v604, 1e-05
    %v637 = vadd.f32 %v605, 1e-05
    %v638 = vadd.f32 %v606, 1e-05
    %v639 = vadd.f32 %v607, 1e-05
    %v640 = vadd.f32 %v608, 1e-05
    %v641 = vadd.f32 %v609, 1e-05
    %v642 = vadd.f32 %v610, 1e-05
    %v643 = vrsqrt.pop %v611
    %v644 = vrsqrt.pop %v612
    %v645 = vrsqrt.pop %v613
    %v646 = vrsqrt.pop %v614
    %v647 = vrsqrt.pop %v615
    %v648 = vrsqrt.pop %v616
    %v649 = vrsqrt.pop %v617
    %v650 = vrsqrt.pop %v618
    %v651 = vrsqrt.pop %v619
    %v652 = vrsqrt.pop %v620
    %v653 = vrsqrt.pop %v621
    %v654 = vrsqrt.pop %v622
    %v655 = vrsqrt.pop %v623
    %v656 = vrsqrt.pop %v624
    %v657 = vrsqrt.pop %v625
    %v658 = vrsqrt.pop %v626
    %v659 = vrsqrt.pop %v627
    %v660 = vrsqrt.pop %v628
    %v661 = vrsqrt.pop %v629
    %v662 = vrsqrt.pop %v630
    %v663 = vrsqrt.pop %v631
    %v664 = vrsqrt.pop %v632
    %v665 = vrsqrt.pop %v633
    %v666 = vrsqrt.pop %v634
    %v667 = vrsqrt.pop %v635
    %v668 = vrsqrt.pop %v636
    %v669 = vrsqrt.pop %v637
    %v670 = vrsqrt.pop %v638
    %v671 = vrsqrt.pop %v639
    %v672 = vrsqrt.pop %v640
    %v673 = vrsqrt.pop %v641
    %v674 = vrsqrt.pop %v642
    %v675 = vld [vmem:[%s5 + $0x1] sm:$0x1]
    %v676 = vlaneseq
    %v677 = vshrl.u32 %v676, 7
    %v678 = vsub.s32 0, %v677
    %v679 = vrot.slane %v675, %v678
    %v680 = vmul.f32 %v643, %v679
    %v681 = vmul.f32 %v644, %v679
    %v682 = vmul.f32 %v645, %v679
    %v683 = vmul.f32 %v646, %v679
    %v684 = vmul.f32 %v647, %v679
    %v685 = vmul.f32 %v648, %v679
    %v686 = vmul.f32 %v649, %v679
    %v687 = vmul.f32 %v650, %v679
    %v688 = vmul.f32 %v651, %v679
    %v689 = vmul.f32 %v652, %v679
    %v690 = vmul.f32 %v653, %v679
    %v691 = vmul.f32 %v654, %v679
    %v692 = vmul.f32 %v655, %v679
    %v693 = vmul.f32 %v656, %v679
    %v694 = vmul.f32 %v657, %v679
    %v695 = vmul.f32 %v658, %v679
    %v696 = vmul.f32 %v659, %v679
    %v697 = vmul.f32 %v660, %v679
    %v698 = vmul.f32 %v661, %v679
    %v699 = vmul.f32 %v662, %v679
    %v700 = vmul.f32 %v663, %v679
    %v701 = vmul.f32 %v664, %v679
    %v702 = vmul.f32 %v665, %v679
    %v703 = vmul.f32 %v666, %v679
    %v704 = vmul.f32 %v667, %v679
    %v705 = vmul.f32 %v668, %v679
    %v706 = vmul.f32 %v669, %v679
    %v707 = vmul.f32 %v670, %v679
    %v708 = vmul.f32 %v671, %v679
    %v709 = vmul.f32 %v672, %v679
    %v710 = vmul.f32 %v673, %v679
    %v711 = vmul.f32 %v674, %v679
    %v712 = vmul.f32 %v451, %v680
    %v713 = vmul.f32 %v452, %v681
    %v714 = vmul.f32 %v453, %v682
    %v715 = vmul.f32 %v454, %v683
    %v716 = vmul.f32 %v455, %v684
    %v717 = vmul.f32 %v456, %v685
    %v718 = vmul.f32 %v457, %v686
    %v719 = vmul.f32 %v458, %v687
    %v720 = vmul.f32 %v459, %v688
    %v721 = vmul.f32 %v460, %v689
    %v722 = vmul.f32 %v461, %v690
    %v723 = vmul.f32 %v462, %v691
    %v724 = vmul.f32 %v463, %v692
    %v725 = vmul.f32 %v464, %v693
    %v726 = vmul.f32 %v465, %v694
    %v727 = vmul.f32 %v466, %v695
    %v728 = vmul.f32 %v467, %v696
    %v729 = vmul.f32 %v468, %v697
    %v730 = vmul.f32 %v469, %v698
    %v731 = vmul.f32 %v470, %v699
    %v732 = vmul.f32 %v471, %v700
    %v733 = vmul.f32 %v472, %v701
    %v734 = vmul.f32 %v473, %v702
    %v735 = vmul.f32 %v474, %v703
    %v736 = vmul.f32 %v475, %v704
    %v737 = vmul.f32 %v476, %v705
    %v738 = vmul.f32 %v477, %v706
    %v739 = vmul.f32 %v478, %v707
    %v740 = vmul.f32 %v479, %v708
    %v741 = vmul.f32 %v480, %v709
    %v742 = vmul.f32 %v481, %v710
    %v743 = vmul.f32 %v482, %v711
    %v744 = vld [vmem:[%s5 + $0x2] sm:$0x1]
    %v745 = vlaneseq
    %v746 = vshrl.u32 %v745, 7
    %v747 = vsub.s32 0, %v746
    %v748 = vrot.slane %v744, %v747
    %v749 = vadd.f32 %v712, %v748
    %v750 = vadd.f32 %v713, %v748
    %v751 = vadd.f32 %v714, %v748
    %v752 = vadd.f32 %v715, %v748
    %v753 = vadd.f32 %v716, %v748
    %v754 = vadd.f32 %v717, %v748
    %v755 = vadd.f32 %v718, %v748
    %v756 = vadd.f32 %v719, %v748
    %v757 = vadd.f32 %v720, %v748
    %v758 = vadd.f32 %v721, %v748
    %v759 = vadd.f32 %v722, %v748
    %v760 = vadd.f32 %v723, %v748
    %v761 = vadd.f32 %v724, %v748
    %v762 = vadd.f32 %v725, %v748
    %v763 = vadd.f32 %v726, %v748
    %v764 = vadd.f32 %v727, %v748
    %v765 = vadd.f32 %v728, %v748
    %v766 = vadd.f32 %v729, %v748
    %v767 = vadd.f32 %v730, %v748
    %v768 = vadd.f32 %v731, %v748
    %v769 = vadd.f32 %v732, %v748
    %v770 = vadd.f32 %v733, %v748
    %v771 = vadd.f32 %v734, %v748
    %v772 = vadd.f32 %v735, %v748
    %v773 = vadd.f32 %v736, %v748
    %v774 = vadd.f32 %v737, %v748
    %v775 = vadd.f32 %v738, %v748
    %v776 = vadd.f32 %v739, %v748
    %v777 = vadd.f32 %v740, %v748
    %v778 = vadd.f32 %v741, %v748
    %v779 = vadd.f32 %v742, %v748
    %v780 = vadd.f32 %v743, %v748
    %v781 = vtanh.pop %v749
    %v782 = vtanh.pop %v750
    %v783 = vtanh.pop %v751
    %v784 = vtanh.pop %v752
    %v785 = vtanh.pop %v753
    %v786 = vtanh.pop %v754
    %v787 = vtanh.pop %v755
    %v788 = vtanh.pop %v756
    %v789 = vtanh.pop %v757
    %v790 = vtanh.pop %v758
    %v791 = vtanh.pop %v759
    %v792 = vtanh.pop %v760
    %v793 = vtanh.pop %v761
    %v794 = vtanh.pop %v762
    %v795 = vtanh.pop %v763
    %v796 = vtanh.pop %v764
    %v797 = vtanh.pop %v765
    %v798 = vtanh.pop %v766
    %v799 = vtanh.pop %v767
    %v800 = vtanh.pop %v768
    %v801 = vtanh.pop %v769
    %v802 = vtanh.pop %v770
    %v803 = vtanh.pop %v771
    %v804 = vtanh.pop %v772
    %v805 = vtanh.pop %v773
    %v806 = vtanh.pop %v774
    %v807 = vtanh.pop %v775
    %v808 = vtanh.pop %v776
    %v809 = vtanh.pop %v777
    %v810 = vtanh.pop %v778
    %v811 = vtanh.pop %v779
    %v812 = vtanh.pop %v780
    %v813 = vpack.c.bf16 %v782, %v781
    %v814 = vpack.c.bf16 %v784, %v783
    %v815 = vpack.c.bf16 %v786, %v785
    %v816 = vpack.c.bf16 %v788, %v787
    %v817 = vpack.c.bf16 %v790, %v789
    %v818 = vpack.c.bf16 %v792, %v791
    %v819 = vpack.c.bf16 %v794, %v793
    %v820 = vpack.c.bf16 %v796, %v795
    %v821 = vpack.c.bf16 %v798, %v797
    %v822 = vpack.c.bf16 %v800, %v799
    %v823 = vpack.c.bf16 %v802, %v801
    %v824 = vpack.c.bf16 %v804, %v803
    %v825 = vpack.c.bf16 %v806, %v805
    %v826 = vpack.c.bf16 %v808, %v807
    %v827 = vpack.c.bf16 %v810, %v809
    %v828 = vpack.c.bf16 %v812, %v811
    %v829 = vld [vmem:[%s2] sm:$0xf]
    %v830 = vld [vmem:[%s2 + $0x4] sm:$0xf]
    %v831 = vld [vmem:[%s2 + $0x8] sm:$0xf]
    %v832 = vld [vmem:[%s2 + $0xc] sm:$0xf]
    %v833 = vld [vmem:[%s2 + $0x10] sm:$0xf]
    %v834 = vld [vmem:[%s2 + $0x14] sm:$0xf]
    %v835 = vld [vmem:[%s2 + $0x18] sm:$0xf]
    %v836 = vld [vmem:[%s2 + $0x1c] sm:$0xf]
    %v837 = vld [vmem:[%s2 + $0x20] sm:$0xf]
    %v838 = vld [vmem:[%s2 + $0x24] sm:$0xf]
    %v839 = vld [vmem:[%s2 + $0x28] sm:$0xf]
    %v840 = vld [vmem:[%s2 + $0x2c] sm:$0xf]
    %v841 = vld [vmem:[%s2 + $0x30] sm:$0xf]
    %v842 = vld [vmem:[%s2 + $0x34] sm:$0xf]
    %v843 = vld [vmem:[%s2 + $0x38] sm:$0xf]
    %v844 = vld [vmem:[%s2 + $0x3c] sm:$0xf]
    %v845 = vld [vmem:[%s5 + $0x3] sm:$0x1]
    %v846 = vlaneseq
    %v847 = vshrl.u32 %v846, 7
    %v848 = vsub.s32 0, %v847
    %v849 = vrot.slane %v845, %v848
    %v866 = vunpack.c.l.b16 %v829
    %v867 = vunpack.c.l.b16 %v830
    %v868 = vunpack.c.l.b16 %v831
    %v869 = vunpack.c.l.b16 %v832
    %v870 = vunpack.c.l.b16 %v833
    %v871 = vunpack.c.l.b16 %v834
    %v872 = vunpack.c.l.b16 %v835
    %v873 = vunpack.c.l.b16 %v836
    %v874 = vunpack.c.l.b16 %v837
    %v875 = vunpack.c.l.b16 %v838
    %v876 = vunpack.c.l.b16 %v839
    %v877 = vunpack.c.l.b16 %v840
    %v878 = vunpack.c.l.b16 %v841
    %v879 = vunpack.c.l.b16 %v842
    %v880 = vunpack.c.l.b16 %v843
    %v881 = vunpack.c.l.b16 %v844
    %v882 = vpack.c.b16 %v867, %v866
    %v883 = vpack.c.b16 %v869, %v868
    %v884 = vpack.c.b16 %v871, %v870
    %v885 = vpack.c.b16 %v873, %v872
    %v886 = vpack.c.b16 %v875, %v874
    %v887 = vpack.c.b16 %v877, %v876
    %v888 = vpack.c.b16 %v879, %v878
    %v889 = vpack.c.b16 %v881, %v880
    %898 = vmatprep.subr.bf16.mxu0 0
    %899 = vmatpush1.bf16.msra.mxu0 %v889
    %900 = vmatprep.subr.bf16.mxu0 0
    %901 = vmatpush1.bf16.msra.mxu0 %v888
    %902 = vmatprep.subr.bf16.mxu0 0
    %903 = vmatpush1.bf16.msra.mxu0 %v887
    %904 = vmatprep.subr.bf16.mxu0 0
    %905 = vmatpush1.bf16.msra.mxu0 %v886
    %906 = vmatprep.subr.bf16.mxu0 0
    %907 = vmatpush1.bf16.msra.mxu0 %v885
    %908 = vmatprep.subr.bf16.mxu0 0
    %909 = vmatpush1.bf16.msra.mxu0 %v884
    %910 = vmatprep.subr.bf16.mxu0 0
    %911 = vmatpush1.bf16.msra.mxu0 %v883
    %912 = vmatprep.subr.bf16.mxu0 0
    %913 = vmatpush1.bf16.msra.mxu0 %v882
    %914 = vmatprep.subr.bf16.mxu0 0
    %915 = vmatpush2.bf16.msra.mxu0 0
    %916 = vmatprep.subr.bf16.mxu0 0
    %917 = vmatpush2.bf16.msra.mxu0 0
    %918 = vmatprep.subr.bf16.mxu0 0
    %919 = vmatpush2.bf16.msra.mxu0 0
    %920 = vmatprep.subr.bf16.mxu0 0
    %921 = vmatpush2.bf16.msra.mxu0 0
    %922 = vmatprep.subr.bf16.mxu0 0
    %923 = vmatpush2.bf16.msra.mxu0 0
    %924 = vmatprep.subr.bf16.mxu0 0
    %925 = vmatpush2.bf16.msra.mxu0 0
    %926 = vmatprep.subr.bf16.mxu0 0
    %927 = vmatpush2.bf16.msra.mxu0 0
    %928 = vmatprep.subr.bf16.mxu0 0
    %929 = vmatpush2.bf16.msra.mxu0 0
    %930 = vmatprep.mubr.bf16.mxu0 0
    %931 = vmatmul.mubr.bf16.gmra.mxu0 %v813
    %v932 = vpop.f32.mrf.mxu0
    %v933 = vadd.f32 %v849, %v932
    %v934 = vpop.f32.mrf.mxu0
    %v935 = vpop.f32.mrf.mxu0
    %v936 = vadd.f32 %v849, %v935
    %v937 = vpop.f32.mrf.mxu0
    %938 = vmatprep.mubr.bf16.mxu0 0
    %939 = vmatmul.mubr.bf16.gmra.mxu0 %v814
    %v940 = vpop.f32.mrf.mxu0
    %v941 = vadd.f32 %v849, %v940
    %v942 = vpop.f32.mrf.mxu0
    %v943 = vpop.f32.mrf.mxu0
    %v944 = vadd.f32 %v849, %v943
    %v945 = vpop.f32.mrf.mxu0
    %946 = vmatprep.mubr.bf16.mxu0 0
    %947 = vmatmul.mubr.bf16.gmra.mxu0 %v815
    %v948 = vpop.f32.mrf.mxu0
    %v949 = vadd.f32 %v849, %v948
    %v950 = vpop.f32.mrf.mxu0
    %v951 = vpop.f32.mrf.mxu0
    %v952 = vadd.f32 %v849, %v951
    %v953 = vpop.f32.mrf.mxu0
    %954 = vmatprep.mubr.bf16.mxu0 0
    %955 = vmatmul.mubr.bf16.gmra.mxu0 %v816
    %v956 = vpop.f32.mrf.mxu0
    %v957 = vadd.f32 %v849, %v956
    %v958 = vpop.f32.mrf.mxu0
    %v959 = vpop.f32.mrf.mxu0
    %v960 = vadd.f32 %v849, %v959
    %v961 = vpop.f32.mrf.mxu0
    %962 = vmatprep.mubr.bf16.mxu0 0
    %963 = vmatmul.mubr.bf16.gmra.mxu0 %v817
    %v964 = vpop.f32.mrf.mxu0
    %v965 = vadd.f32 %v849, %v964
    %v966 = vpop.f32.mrf.mxu0
    %v967 = vpop.f32.mrf.mxu0
    %v968 = vadd.f32 %v849, %v967
    %v969 = vpop.f32.mrf.mxu0
    %970 = vmatprep.mubr.bf16.mxu0 0
    %971 = vmatmul.mubr.bf16.gmra.mxu0 %v818
    %v972 = vpop.f32.mrf.mxu0
    %v973 = vadd.f32 %v849, %v972
    %v974 = vpop.f32.mrf.mxu0
    %v975 = vpop.f32.mrf.mxu0
    %v976 = vadd.f32 %v849, %v975
    %v977 = vpop.f32.mrf.mxu0
    %978 = vmatprep.mubr.bf16.mxu0 0
    %979 = vmatmul.mubr.bf16.gmra.mxu0 %v819
    %v980 = vpop.f32.mrf.mxu0
    %v981 = vadd.f32 %v849, %v980
    %v982 = vpop.f32.mrf.mxu0
    %v983 = vpop.f32.mrf.mxu0
    %v984 = vadd.f32 %v849, %v983
    %v985 = vpop.f32.mrf.mxu0
    %986 = vmatprep.mubr.bf16.mxu0 0
    %987 = vmatmul.mubr.bf16.gmra.mxu0 %v820
    %v988 = vpop.f32.mrf.mxu0
    %v989 = vadd.f32 %v849, %v988
    %v990 = vpop.f32.mrf.mxu0
    %v991 = vpop.f32.mrf.mxu0
    %v992 = vadd.f32 %v849, %v991
    %v993 = vpop.f32.mrf.mxu0
    %994 = vmatprep.mubr.bf16.mxu0 0
    %995 = vmatmul.mubr.bf16.gmra.mxu0 %v821
    %v996 = vpop.f32.mrf.mxu0
    %v997 = vadd.f32 %v849, %v996
    %v998 = vpop.f32.mrf.mxu0
    %v999 = vpop.f32.mrf.mxu0
    %v1000 = vadd.f32 %v849, %v999
    %v1001 = vpop.f32.mrf.mxu0
    %1002 = vmatprep.mubr.bf16.mxu0 0
    %1003 = vmatmul.mubr.bf16.gmra.mxu0 %v822
    %v1004 = vpop.f32.mrf.mxu0
    %v1005 = vadd.f32 %v849, %v1004
    %v1006 = vpop.f32.mrf.mxu0
    %v1007 = vpop.f32.mrf.mxu0
    %v1008 = vadd.f32 %v849, %v1007
    %v1009 = vpop.f32.mrf.mxu0
    %1010 = vmatprep.mubr.bf16.mxu0 0
    %1011 = vmatmul.mubr.bf16.gmra.mxu0 %v823
    %v1012 = vpop.f32.mrf.mxu0
    %v1013 = vadd.f32 %v849, %v1012
    %v1014 = vpop.f32.mrf.mxu0
    %v1015 = vpop.f32.mrf.mxu0
    %v1016 = vadd.f32 %v849, %v1015
    %v1017 = vpop.f32.mrf.mxu0
    %1018 = vmatprep.mubr.bf16.mxu0 0
    %1019 = vmatmul.mubr.bf16.gmra.mxu0 %v824
    %v1020 = vpop.f32.mrf.mxu0
    %v1021 = vadd.f32 %v849, %v1020
    %v1022 = vpop.f32.mrf.mxu0
    %v1023 = vpop.f32.mrf.mxu0
    %v1024 = vadd.f32 %v849, %v1023
    %v1025 = vpop.f32.mrf.mxu0
    %1026 = vmatprep.mubr.bf16.mxu0 0
    %1027 = vmatmul.mubr.bf16.gmra.mxu0 %v825
    %v1028 = vpop.f32.mrf.mxu0
    %v1029 = vadd.f32 %v849, %v1028
    %v1030 = vpop.f32.mrf.mxu0
    %v1031 = vpop.f32.mrf.mxu0
    %v1032 = vadd.f32 %v849, %v1031
    %v1033 = vpop.f32.mrf.mxu0
    %1034 = vmatprep.mubr.bf16.mxu0 0
    %1035 = vmatmul.mubr.bf16.gmra.mxu0 %v826
    %v1036 = vpop.f32.mrf.mxu0
    %v1037 = vadd.f32 %v849, %v1036
    %v1038 = vpop.f32.mrf.mxu0
    %v1039 = vpop.f32.mrf.mxu0
    %v1040 = vadd.f32 %v849, %v1039
    %v1041 = vpop.f32.mrf.mxu0
    %1042 = vmatprep.mubr.bf16.mxu0 0
    %1043 = vmatmul.mubr.bf16.gmra.mxu0 %v827
    %v1044 = vpop.f32.mrf.mxu0
    %v1045 = vadd.f32 %v849, %v1044
    %v1046 = vpop.f32.mrf.mxu0
    %v1047 = vpop.f32.mrf.mxu0
    %v1048 = vadd.f32 %v849, %v1047
    %v1049 = vpop.f32.mrf.mxu0
    %1050 = vmatprep.mubr.bf16.mxu0 0
    %1051 = vmatmul.mubr.bf16.gmra.mxu0 %v828
    %v1052 = vpop.f32.mrf.mxu0
    %v1053 = vadd.f32 %v849, %v1052
    %v1054 = vpop.f32.mrf.mxu0
    %v1055 = vpop.f32.mrf.mxu0
    %v1056 = vadd.f32 %v849, %v1055
    %v1057 = vpop.f32.mrf.mxu0
    %1058 = vdwg.mxu0
    %v1059 = vmax.f32 %v933, 0.0
    %v1060 = vmax.f32 %v936, 0.0
    %v1061 = vmax.f32 %v941, 0.0
    %v1062 = vmax.f32 %v944, 0.0
    %v1063 = vmax.f32 %v949, 0.0
    %v1064 = vmax.f32 %v952, 0.0
    %v1065 = vmax.f32 %v957, 0.0
    %v1066 = vmax.f32 %v960, 0.0
    %v1067 = vmax.f32 %v965, 0.0
    %v1068 = vmax.f32 %v968, 0.0
    %v1069 = vmax.f32 %v973, 0.0
    %v1070 = vmax.f32 %v976, 0.0
    %v1071 = vmax.f32 %v981, 0.0
    %v1072 = vmax.f32 %v984, 0.0
    %v1073 = vmax.f32 %v989, 0.0
    %v1074 = vmax.f32 %v992, 0.0
    %v1075 = vmax.f32 %v997, 0.0
    %v1076 = vmax.f32 %v1000, 0.0
    %v1077 = vmax.f32 %v1005, 0.0
    %v1078 = vmax.f32 %v1008, 0.0
    %v1079 = vmax.f32 %v1013, 0.0
    %v1080 = vmax.f32 %v1016, 0.0
    %v1081 = vmax.f32 %v1021, 0.0
    %v1082 = vmax.f32 %v1024, 0.0
    %v1083 = vmax.f32 %v1029, 0.0
    %v1084 = vmax.f32 %v1032, 0.0
    %v1085 = vmax.f32 %v1037, 0.0
    %v1086 = vmax.f32 %v1040, 0.0
    %v1087 = vmax.f32 %v1045, 0.0
    %v1088 = vmax.f32 %v1048, 0.0
    %v1089 = vmax.f32 %v1053, 0.0
    %v1090 = vmax.f32 %v1056, 0.0
    %v1091 = vpack.c.bf16 %v1060, %v1059
    %v1092 = vpack.c.bf16 %v1062, %v1061
    %v1093 = vpack.c.bf16 %v1064, %v1063
    %v1094 = vpack.c.bf16 %v1066, %v1065
    %v1095 = vpack.c.bf16 %v1068, %v1067
    %v1096 = vpack.c.bf16 %v1070, %v1069
    %v1097 = vpack.c.bf16 %v1072, %v1071
    %v1098 = vpack.c.bf16 %v1074, %v1073
    %v1099 = vpack.c.bf16 %v1076, %v1075
    %v1100 = vpack.c.bf16 %v1078, %v1077
    %v1101 = vpack.c.bf16 %v1080, %v1079
    %v1102 = vpack.c.bf16 %v1082, %v1081
    %v1103 = vpack.c.bf16 %v1084, %v1083
    %v1104 = vpack.c.bf16 %v1086, %v1085
    %v1105 = vpack.c.bf16 %v1088, %v1087
    %v1106 = vpack.c.bf16 %v1090, %v1089
    %v1107 = vld [vmem:[%s3] sm:$0xf]
    %v1108 = vld [vmem:[%s3 + $0x4] sm:$0xf]
    %v1109 = vld [vmem:[%s3 + $0x8] sm:$0xf]
    %v1110 = vld [vmem:[%s3 + $0xc] sm:$0xf]
    %v1111 = vld [vmem:[%s3 + $0x10] sm:$0xf]
    %v1112 = vld [vmem:[%s3 + $0x14] sm:$0xf]
    %v1113 = vld [vmem:[%s3 + $0x18] sm:$0xf]
    %v1114 = vld [vmem:[%s3 + $0x1c] sm:$0xf]
    %v1115 = vld [vmem:[%s3 + $0x20] sm:$0xf]
    %v1116 = vld [vmem:[%s3 + $0x24] sm:$0xf]
    %v1117 = vld [vmem:[%s3 + $0x28] sm:$0xf]
    %v1118 = vld [vmem:[%s3 + $0x2c] sm:$0xf]
    %v1119 = vld [vmem:[%s3 + $0x30] sm:$0xf]
    %v1120 = vld [vmem:[%s3 + $0x34] sm:$0xf]
    %v1121 = vld [vmem:[%s3 + $0x38] sm:$0xf]
    %v1122 = vld [vmem:[%s3 + $0x3c] sm:$0xf]
    %v1123 = vld [vmem:[%s5 + $0x4] sm:$0x1]
    %v1124 = vlaneseq
    %v1125 = vshrl.u32 %v1124, 7
    %v1126 = vsub.s32 0, %v1125
    %v1127 = vrot.slane %v1123, %v1126
    %v1144 = vunpack.c.l.b16 %v1107
    %v1145 = vunpack.c.l.b16 %v1108
    %v1146 = vunpack.c.l.b16 %v1109
    %v1147 = vunpack.c.l.b16 %v1110
    %v1148 = vunpack.c.l.b16 %v1111
    %v1149 = vunpack.c.l.b16 %v1112
    %v1150 = vunpack.c.l.b16 %v1113
    %v1151 = vunpack.c.l.b16 %v1114
    %v1152 = vunpack.c.l.b16 %v1115
    %v1153 = vunpack.c.l.b16 %v1116
    %v1154 = vunpack.c.l.b16 %v1117
    %v1155 = vunpack.c.l.b16 %v1118
    %v1156 = vunpack.c.l.b16 %v1119
    %v1157 = vunpack.c.l.b16 %v1120
    %v1158 = vunpack.c.l.b16 %v1121
    %v1159 = vunpack.c.l.b16 %v1122
    %v1160 = vpack.c.b16 %v1145, %v1144
    %v1161 = vpack.c.b16 %v1147, %v1146
    %v1162 = vpack.c.b16 %v1149, %v1148
    %v1163 = vpack.c.b16 %v1151, %v1150
    %v1164 = vpack.c.b16 %v1153, %v1152
    %v1165 = vpack.c.b16 %v1155, %v1154
    %v1166 = vpack.c.b16 %v1157, %v1156
    %v1167 = vpack.c.b16 %v1159, %v1158
    %1176 = vmatprep.subr.bf16.mxu0 0
    %1177 = vmatpush1.bf16.msra.mxu0 %v1167
    %1178 = vmatprep.subr.bf16.mxu0 0
    %1179 = vmatpush1.bf16.msra.mxu0 %v1166
    %1180 = vmatprep.subr.bf16.mxu0 0
    %1181 = vmatpush1.bf16.msra.mxu0 %v1165
    %1182 = vmatprep.subr.bf16.mxu0 0
    %1183 = vmatpush1.bf16.msra.mxu0 %v1164
    %1184 = vmatprep.subr.bf16.mxu0 0
    %1185 = vmatpush1.bf16.msra.mxu0 %v1163
    %1186 = vmatprep.subr.bf16.mxu0 0
    %1187 = vmatpush1.bf16.msra.mxu0 %v1162
    %1188 = vmatprep.subr.bf16.mxu0 0
    %1189 = vmatpush1.bf16.msra.mxu0 %v1161
    %1190 = vmatprep.subr.bf16.mxu0 0
    %1191 = vmatpush1.bf16.msra.mxu0 %v1160
    %1192 = vmatprep.subr.bf16.mxu0 0
    %1193 = vmatpush2.bf16.msra.mxu0 0
    %1194 = vmatprep.subr.bf16.mxu0 0
    %1195 = vmatpush2.bf16.msra.mxu0 0
    %1196 = vmatprep.subr.bf16.mxu0 0
    %1197 = vmatpush2.bf16.msra.mxu0 0
    %1198 = vmatprep.subr.bf16.mxu0 0
    %1199 = vmatpush2.bf16.msra.mxu0 0
    %1200 = vmatprep.subr.bf16.mxu0 0
    %1201 = vmatpush2.bf16.msra.mxu0 0
    %1202 = vmatprep.subr.bf16.mxu0 0
    %1203 = vmatpush2.bf16.msra.mxu0 0
    %1204 = vmatprep.subr.bf16.mxu0 0
    %1205 = vmatpush2.bf16.msra.mxu0 0
    %1206 = vmatprep.subr.bf16.mxu0 0
    %1207 = vmatpush2.bf16.msra.mxu0 0
    %1208 = vmatprep.mubr.bf16.mxu0 0
    %1209 = vmatmul.mubr.bf16.gmra.mxu0 %v1091
    %v1210 = vpop.f32.mrf.mxu0
    %v1211 = vadd.f32 %v1127, %v1210
    %v1212 = vpop.f32.mrf.mxu0
    %v1213 = vpop.f32.mrf.mxu0
    %v1214 = vadd.f32 %v1127, %v1213
    %v1215 = vpop.f32.mrf.mxu0
    %1216 = vmatprep.mubr.bf16.mxu0 0
    %1217 = vmatmul.mubr.bf16.gmra.mxu0 %v1092
    %v1218 = vpop.f32.mrf.mxu0
    %v1219 = vadd.f32 %v1127, %v1218
    %v1220 = vpop.f32.mrf.mxu0
    %v1221 = vpop.f32.mrf.mxu0
    %v1222 = vadd.f32 %v1127, %v1221
    %v1223 = vpop.f32.mrf.mxu0
    %1224 = vmatprep.mubr.bf16.mxu0 0
    %1225 = vmatmul.mubr.bf16.gmra.mxu0 %v1093
    %v1226 = vpop.f32.mrf.mxu0
    %v1227 = vadd.f32 %v1127, %v1226
    %v1228 = vpop.f32.mrf.mxu0
    %v1229 = vpop.f32.mrf.mxu0
    %v1230 = vadd.f32 %v1127, %v1229
    %v1231 = vpop.f32.mrf.mxu0
    %1232 = vmatprep.mubr.bf16.mxu0 0
    %1233 = vmatmul.mubr.bf16.gmra.mxu0 %v1094
    %v1234 = vpop.f32.mrf.mxu0
    %v1235 = vadd.f32 %v1127, %v1234
    %v1236 = vpop.f32.mrf.mxu0
    %v1237 = vpop.f32.mrf.mxu0
    %v1238 = vadd.f32 %v1127, %v1237
    %v1239 = vpop.f32.mrf.mxu0
    %1240 = vmatprep.mubr.bf16.mxu0 0
    %1241 = vmatmul.mubr.bf16.gmra.mxu0 %v1095
    %v1242 = vpop.f32.mrf.mxu0
    %v1243 = vadd.f32 %v1127, %v1242
    %v1244 = vpop.f32.mrf.mxu0
    %v1245 = vpop.f32.mrf.mxu0
    %v1246 = vadd.f32 %v1127, %v1245
    %v1247 = vpop.f32.mrf.mxu0
    %1248 = vmatprep.mubr.bf16.mxu0 0
    %1249 = vmatmul.mubr.bf16.gmra.mxu0 %v1096
    %v1250 = vpop.f32.mrf.mxu0
    %v1251 = vadd.f32 %v1127, %v1250
    %v1252 = vpop.f32.mrf.mxu0
    %v1253 = vpop.f32.mrf.mxu0
    %v1254 = vadd.f32 %v1127, %v1253
    %v1255 = vpop.f32.mrf.mxu0
    %1256 = vmatprep.mubr.bf16.mxu0 0
    %1257 = vmatmul.mubr.bf16.gmra.mxu0 %v1097
    %v1258 = vpop.f32.mrf.mxu0
    %v1259 = vadd.f32 %v1127, %v1258
    %v1260 = vpop.f32.mrf.mxu0
    %v1261 = vpop.f32.mrf.mxu0
    %v1262 = vadd.f32 %v1127, %v1261
    %v1263 = vpop.f32.mrf.mxu0
    %1264 = vmatprep.mubr.bf16.mxu0 0
    %1265 = vmatmul.mubr.bf16.gmra.mxu0 %v1098
    %v1266 = vpop.f32.mrf.mxu0
    %v1267 = vadd.f32 %v1127, %v1266
    %v1268 = vpop.f32.mrf.mxu0
    %v1269 = vpop.f32.mrf.mxu0
    %v1270 = vadd.f32 %v1127, %v1269
    %v1271 = vpop.f32.mrf.mxu0
    %1272 = vmatprep.mubr.bf16.mxu0 0
    %1273 = vmatmul.mubr.bf16.gmra.mxu0 %v1099
    %v1274 = vpop.f32.mrf.mxu0
    %v1275 = vadd.f32 %v1127, %v1274
    %v1276 = vpop.f32.mrf.mxu0
    %v1277 = vpop.f32.mrf.mxu0
    %v1278 = vadd.f32 %v1127, %v1277
    %v1279 = vpop.f32.mrf.mxu0
    %1280 = vmatprep.mubr.bf16.mxu0 0
    %1281 = vmatmul.mubr.bf16.gmra.mxu0 %v1100
    %v1282 = vpop.f32.mrf.mxu0
    %v1283 = vadd.f32 %v1127, %v1282
    %v1284 = vpop.f32.mrf.mxu0
    %v1285 = vpop.f32.mrf.mxu0
    %v1286 = vadd.f32 %v1127, %v1285
    %v1287 = vpop.f32.mrf.mxu0
    %1288 = vmatprep.mubr.bf16.mxu0 0
    %1289 = vmatmul.mubr.bf16.gmra.mxu0 %v1101
    %v1290 = vpop.f32.mrf.mxu0
    %v1291 = vadd.f32 %v1127, %v1290
    %v1292 = vpop.f32.mrf.mxu0
    %v1293 = vpop.f32.mrf.mxu0
    %v1294 = vadd.f32 %v1127, %v1293
    %v1295 = vpop.f32.mrf.mxu0
    %1296 = vmatprep.mubr.bf16.mxu0 0
    %1297 = vmatmul.mubr.bf16.gmra.mxu0 %v1102
    %v1298 = vpop.f32.mrf.mxu0
    %v1299 = vadd.f32 %v1127, %v1298
    %v1300 = vpop.f32.mrf.mxu0
    %v1301 = vpop.f32.mrf.mxu0
    %v1302 = vadd.f32 %v1127, %v1301
    %v1303 = vpop.f32.mrf.mxu0
    %1304 = vmatprep.mubr.bf16.mxu0 0
    %1305 = vmatmul.mubr.bf16.gmra.mxu0 %v1103
    %v1306 = vpop.f32.mrf.mxu0
    %v1307 = vadd.f32 %v1127, %v1306
    %v1308 = vpop.f32.mrf.mxu0
    %v1309 = vpop.f32.mrf.mxu0
    %v1310 = vadd.f32 %v1127, %v1309
    %v1311 = vpop.f32.mrf.mxu0
    %1312 = vmatprep.mubr.bf16.mxu0 0
    %1313 = vmatmul.mubr.bf16.gmra.mxu0 %v1104
    %v1314 = vpop.f32.mrf.mxu0
    %v1315 = vadd.f32 %v1127, %v1314
    %v1316 = vpop.f32.mrf.mxu0
    %v1317 = vpop.f32.mrf.mxu0
    %v1318 = vadd.f32 %v1127, %v1317
    %v1319 = vpop.f32.mrf.mxu0
    %1320 = vmatprep.mubr.bf16.mxu0 0
    %1321 = vmatmul.mubr.bf16.gmra.mxu0 %v1105
    %v1322 = vpop.f32.mrf.mxu0
    %v1323 = vadd.f32 %v1127, %v1322
    %v1324 = vpop.f32.mrf.mxu0
    %v1325 = vpop.f32.mrf.mxu0
    %v1326 = vadd.f32 %v1127, %v1325
    %v1327 = vpop.f32.mrf.mxu0
    %1328 = vmatprep.mubr.bf16.mxu0 0
    %1329 = vmatmul.mubr.bf16.gmra.mxu0 %v1106
    %v1330 = vpop.f32.mrf.mxu0
    %v1331 = vadd.f32 %v1127, %v1330
    %v1332 = vpop.f32.mrf.mxu0
    %v1333 = vpop.f32.mrf.mxu0
    %v1334 = vadd.f32 %v1127, %v1333
    %v1335 = vpop.f32.mrf.mxu0
    %1336 = vdwg.mxu0
    %v1337 = vmax.f32 %v1211, 0.0
    %v1338 = vmax.f32 %v1214, 0.0
    %v1339 = vmax.f32 %v1219, 0.0
    %v1340 = vmax.f32 %v1222, 0.0
    %v1341 = vmax.f32 %v1227, 0.0
    %v1342 = vmax.f32 %v1230, 0.0
    %v1343 = vmax.f32 %v1235, 0.0
    %v1344 = vmax.f32 %v1238, 0.0
    %v1345 = vmax.f32 %v1243, 0.0
    %v1346 = vmax.f32 %v1246, 0.0
    %v1347 = vmax.f32 %v1251, 0.0
    %v1348 = vmax.f32 %v1254, 0.0
    %v1349 = vmax.f32 %v1259, 0.0
    %v1350 = vmax.f32 %v1262, 0.0
    %v1351 = vmax.f32 %v1267, 0.0
    %v1352 = vmax.f32 %v1270, 0.0
    %v1353 = vmax.f32 %v1275, 0.0
    %v1354 = vmax.f32 %v1278, 0.0
    %v1355 = vmax.f32 %v1283, 0.0
    %v1356 = vmax.f32 %v1286, 0.0
    %v1357 = vmax.f32 %v1291, 0.0
    %v1358 = vmax.f32 %v1294, 0.0
    %v1359 = vmax.f32 %v1299, 0.0
    %v1360 = vmax.f32 %v1302, 0.0
    %v1361 = vmax.f32 %v1307, 0.0
    %v1362 = vmax.f32 %v1310, 0.0
    %v1363 = vmax.f32 %v1315, 0.0
    %v1364 = vmax.f32 %v1318, 0.0
    %v1365 = vmax.f32 %v1323, 0.0
    %v1366 = vmax.f32 %v1326, 0.0
    %v1367 = vmax.f32 %v1331, 0.0
    %v1368 = vmax.f32 %v1334, 0.0
    %v1369 = vpack.c.bf16 %v1338, %v1337
    %v1370 = vpack.c.bf16 %v1340, %v1339
    %v1371 = vpack.c.bf16 %v1342, %v1341
    %v1372 = vpack.c.bf16 %v1344, %v1343
    %v1373 = vpack.c.bf16 %v1346, %v1345
    %v1374 = vpack.c.bf16 %v1348, %v1347
    %v1375 = vpack.c.bf16 %v1350, %v1349
    %v1376 = vpack.c.bf16 %v1352, %v1351
    %v1377 = vpack.c.bf16 %v1354, %v1353
    %v1378 = vpack.c.bf16 %v1356, %v1355
    %v1379 = vpack.c.bf16 %v1358, %v1357
    %v1380 = vpack.c.bf16 %v1360, %v1359
    %v1381 = vpack.c.bf16 %v1362, %v1361
    %v1382 = vpack.c.bf16 %v1364, %v1363
    %v1383 = vpack.c.bf16 %v1366, %v1365
    %v1384 = vpack.c.bf16 %v1368, %v1367
    %v1385 = vld [vmem:[%s4] sm:$0xf]
    %v1386 = vld [vmem:[%s4 + $0x4] sm:$0xf]
    %v1387 = vld [vmem:[%s4 + $0x8] sm:$0xf]
    %v1388 = vld [vmem:[%s4 + $0xc] sm:$0xf]
    %v1389 = vld [vmem:[%s4 + $0x10] sm:$0xf]
    %v1390 = vld [vmem:[%s4 + $0x14] sm:$0xf]
    %v1391 = vld [vmem:[%s4 + $0x18] sm:$0xf]
    %v1392 = vld [vmem:[%s4 + $0x1c] sm:$0xf]
    %v1393 = vld [vmem:[%s4 + $0x20] sm:$0xf]
    %v1394 = vld [vmem:[%s4 + $0x24] sm:$0xf]
    %v1395 = vld [vmem:[%s4 + $0x28] sm:$0xf]
    %v1396 = vld [vmem:[%s4 + $0x2c] sm:$0xf]
    %v1397 = vld [vmem:[%s4 + $0x30] sm:$0xf]
    %v1398 = vld [vmem:[%s4 + $0x34] sm:$0xf]
    %v1399 = vld [vmem:[%s4 + $0x38] sm:$0xf]
    %v1400 = vld [vmem:[%s4 + $0x3c] sm:$0xf]
    %v1401 = vld [vmem:[%s5 + $0x5] sm:$0x1]
    %v1402 = vlaneseq
    %v1403 = vshrl.u32 %v1402, 7
    %v1404 = vsub.s32 0, %v1403
    %v1405 = vrot.slane %v1401, %v1404
    %v1422 = vunpack.c.l.b16 %v1385
    %v1423 = vunpack.c.l.b16 %v1386
    %v1424 = vunpack.c.l.b16 %v1387
    %v1425 = vunpack.c.l.b16 %v1388
    %v1426 = vunpack.c.l.b16 %v1389
    %v1427 = vunpack.c.l.b16 %v1390
    %v1428 = vunpack.c.l.b16 %v1391
    %v1429 = vunpack.c.l.b16 %v1392
    %v1430 = vunpack.c.l.b16 %v1393
    %v1431 = vunpack.c.l.b16 %v1394
    %v1432 = vunpack.c.l.b16 %v1395
    %v1433 = vunpack.c.l.b16 %v1396
    %v1434 = vunpack.c.l.b16 %v1397
    %v1435 = vunpack.c.l.b16 %v1398
    %v1436 = vunpack.c.l.b16 %v1399
    %v1437 = vunpack.c.l.b16 %v1400
    %v1438 = vpack.c.b16 %v1423, %v1422
    %v1439 = vpack.c.b16 %v1425, %v1424
    %v1440 = vpack.c.b16 %v1427, %v1426
    %v1441 = vpack.c.b16 %v1429, %v1428
    %v1442 = vpack.c.b16 %v1431, %v1430
    %v1443 = vpack.c.b16 %v1433, %v1432
    %v1444 = vpack.c.b16 %v1435, %v1434
    %v1445 = vpack.c.b16 %v1437, %v1436
    %1454 = vmatprep.subr.bf16.mxu0 0
    %1455 = vmatpush1.bf16.msra.mxu0 %v1445
    %1456 = vmatprep.subr.bf16.mxu0 0
    %1457 = vmatpush1.bf16.msra.mxu0 %v1444
    %1458 = vmatprep.subr.bf16.mxu0 0
    %1459 = vmatpush1.bf16.msra.mxu0 %v1443
    %1460 = vmatprep.subr.bf16.mxu0 0
    %1461 = vmatpush1.bf16.msra.mxu0 %v1442
    %1462 = vmatprep.subr.bf16.mxu0 0
    %1463 = vmatpush1.bf16.msra.mxu0 %v1441
    %1464 = vmatprep.subr.bf16.mxu0 0
    %1465 = vmatpush1.bf16.msra.mxu0 %v1440
    %1466 = vmatprep.subr.bf16.mxu0 0
    %1467 = vmatpush1.bf16.msra.mxu0 %v1439
    %1468 = vmatprep.subr.bf16.mxu0 0
    %1469 = vmatpush1.bf16.msra.mxu0 %v1438
    %1470 = vmatprep.subr.bf16.mxu0 0
    %1471 = vmatpush2.bf16.msra.mxu0 0
    %1472 = vmatprep.subr.bf16.mxu0 0
    %1473 = vmatpush2.bf16.msra.mxu0 0
    %1474 = vmatprep.subr.bf16.mxu0 0
    %1475 = vmatpush2.bf16.msra.mxu0 0
    %1476 = vmatprep.subr.bf16.mxu0 0
    %1477 = vmatpush2.bf16.msra.mxu0 0
    %1478 = vmatprep.subr.bf16.mxu0 0
    %1479 = vmatpush2.bf16.msra.mxu0 0
    %1480 = vmatprep.subr.bf16.mxu0 0
    %1481 = vmatpush2.bf16.msra.mxu0 0
    %1482 = vmatprep.subr.bf16.mxu0 0
    %1483 = vmatpush2.bf16.msra.mxu0 0
    %1484 = vmatprep.subr.bf16.mxu0 0
    %1485 = vmatpush2.bf16.msra.mxu0 0
    %1486 = vmatprep.mubr.bf16.mxu0 0
    %1487 = vmatmul.mubr.bf16.gmra.mxu0 %v1369
    %v1488 = vpop.f32.mrf.mxu0
    %v1489 = vadd.f32 %v1405, %v1488
    %v1490 = vpop.f32.mrf.mxu0
    %v1491 = vpop.f32.mrf.mxu0
    %v1492 = vadd.f32 %v1405, %v1491
    %v1493 = vpop.f32.mrf.mxu0
    %1494 = vmatprep.mubr.bf16.mxu0 0
    %1495 = vmatmul.mubr.bf16.gmra.mxu0 %v1370
    %v1496 = vpop.f32.mrf.mxu0
    %v1497 = vadd.f32 %v1405, %v1496
    %v1498 = vpop.f32.mrf.mxu0
    %v1499 = vpop.f32.mrf.mxu0
    %v1500 = vadd.f32 %v1405, %v1499
    %v1501 = vpop.f32.mrf.mxu0
    %1502 = vmatprep.mubr.bf16.mxu0 0
    %1503 = vmatmul.mubr.bf16.gmra.mxu0 %v1371
    %v1504 = vpop.f32.mrf.mxu0
    %v1505 = vadd.f32 %v1405, %v1504
    %v1506 = vpop.f32.mrf.mxu0
    %v1507 = vpop.f32.mrf.mxu0
    %v1508 = vadd.f32 %v1405, %v1507
    %v1509 = vpop.f32.mrf.mxu0
    %1510 = vmatprep.mubr.bf16.mxu0 0
    %1511 = vmatmul.mubr.bf16.gmra.mxu0 %v1372
    %v1512 = vpop.f32.mrf.mxu0
    %v1513 = vadd.f32 %v1405, %v1512
    %v1514 = vpop.f32.mrf.mxu0
    %v1515 = vpop.f32.mrf.mxu0
    %v1516 = vadd.f32 %v1405, %v1515
    %v1517 = vpop.f32.mrf.mxu0
    %1518 = vmatprep.mubr.bf16.mxu0 0
    %1519 = vmatmul.mubr.bf16.gmra.mxu0 %v1373
    %v1520 = vpop.f32.mrf.mxu0
    %v1521 = vadd.f32 %v1405, %v1520
    %v1522 = vpop.f32.mrf.mxu0
    %v1523 = vpop.f32.mrf.mxu0
    %v1524 = vadd.f32 %v1405, %v1523
    %v1525 = vpop.f32.mrf.mxu0
    %1526 = vmatprep.mubr.bf16.mxu0 0
    %1527 = vmatmul.mubr.bf16.gmra.mxu0 %v1374
    %v1528 = vpop.f32.mrf.mxu0
    %v1529 = vadd.f32 %v1405, %v1528
    %v1530 = vpop.f32.mrf.mxu0
    %v1531 = vpop.f32.mrf.mxu0
    %v1532 = vadd.f32 %v1405, %v1531
    %v1533 = vpop.f32.mrf.mxu0
    %1534 = vmatprep.mubr.bf16.mxu0 0
    %1535 = vmatmul.mubr.bf16.gmra.mxu0 %v1375
    %v1536 = vpop.f32.mrf.mxu0
    %v1537 = vadd.f32 %v1405, %v1536
    %v1538 = vpop.f32.mrf.mxu0
    %v1539 = vpop.f32.mrf.mxu0
    %v1540 = vadd.f32 %v1405, %v1539
    %v1541 = vpop.f32.mrf.mxu0
    %1542 = vmatprep.mubr.bf16.mxu0 0
    %1543 = vmatmul.mubr.bf16.gmra.mxu0 %v1376
    %v1544 = vpop.f32.mrf.mxu0
    %v1545 = vadd.f32 %v1405, %v1544
    %v1546 = vpop.f32.mrf.mxu0
    %v1547 = vpop.f32.mrf.mxu0
    %v1548 = vadd.f32 %v1405, %v1547
    %v1549 = vpop.f32.mrf.mxu0
    %1550 = vmatprep.mubr.bf16.mxu0 0
    %1551 = vmatmul.mubr.bf16.gmra.mxu0 %v1377
    %v1552 = vpop.f32.mrf.mxu0
    %v1553 = vadd.f32 %v1405, %v1552
    %v1554 = vpop.f32.mrf.mxu0
    %v1555 = vpop.f32.mrf.mxu0
    %v1556 = vadd.f32 %v1405, %v1555
    %v1557 = vpop.f32.mrf.mxu0
    %1558 = vmatprep.mubr.bf16.mxu0 0
    %1559 = vmatmul.mubr.bf16.gmra.mxu0 %v1378
    %v1560 = vpop.f32.mrf.mxu0
    %v1561 = vadd.f32 %v1405, %v1560
    %v1562 = vpop.f32.mrf.mxu0
    %v1563 = vpop.f32.mrf.mxu0
    %v1564 = vadd.f32 %v1405, %v1563
    %v1565 = vpop.f32.mrf.mxu0
    %1566 = vmatprep.mubr.bf16.mxu0 0
    %1567 = vmatmul.mubr.bf16.gmra.mxu0 %v1379
    %v1568 = vpop.f32.mrf.mxu0
    %v1569 = vadd.f32 %v1405, %v1568
    %v1570 = vpop.f32.mrf.mxu0
    %v1571 = vpop.f32.mrf.mxu0
    %v1572 = vadd.f32 %v1405, %v1571
    %v1573 = vpop.f32.mrf.mxu0
    %1574 = vmatprep.mubr.bf16.mxu0 0
    %1575 = vmatmul.mubr.bf16.gmra.mxu0 %v1380
    %v1576 = vpop.f32.mrf.mxu0
    %v1577 = vadd.f32 %v1405, %v1576
    %v1578 = vpop.f32.mrf.mxu0
    %v1579 = vpop.f32.mrf.mxu0
    %v1580 = vadd.f32 %v1405, %v1579
    %v1581 = vpop.f32.mrf.mxu0
    %1582 = vmatprep.mubr.bf16.mxu0 0
    %1583 = vmatmul.mubr.bf16.gmra.mxu0 %v1381
    %v1584 = vpop.f32.mrf.mxu0
    %v1585 = vadd.f32 %v1405, %v1584
    %v1586 = vpop.f32.mrf.mxu0
    %v1587 = vpop.f32.mrf.mxu0
    %v1588 = vadd.f32 %v1405, %v1587
    %v1589 = vpop.f32.mrf.mxu0
    %1590 = vmatprep.mubr.bf16.mxu0 0
    %1591 = vmatmul.mubr.bf16.gmra.mxu0 %v1382
    %v1592 = vpop.f32.mrf.mxu0
    %v1593 = vadd.f32 %v1405, %v1592
    %v1594 = vpop.f32.mrf.mxu0
    %v1595 = vpop.f32.mrf.mxu0
    %v1596 = vadd.f32 %v1405, %v1595
    %v1597 = vpop.f32.mrf.mxu0
    %1598 = vmatprep.mubr.bf16.mxu0 0
    %1599 = vmatmul.mubr.bf16.gmra.mxu0 %v1383
    %v1600 = vpop.f32.mrf.mxu0
    %v1601 = vadd.f32 %v1405, %v1600
    %v1602 = vpop.f32.mrf.mxu0
    %v1603 = vpop.f32.mrf.mxu0
    %v1604 = vadd.f32 %v1405, %v1603
    %v1605 = vpop.f32.mrf.mxu0
    %1606 = vmatprep.mubr.bf16.mxu0 0
    %1607 = vmatmul.mubr.bf16.gmra.mxu0 %v1384
    %v1608 = vpop.f32.mrf.mxu0
    %v1609 = vadd.f32 %v1405, %v1608
    %v1610 = vpop.f32.mrf.mxu0
    %v1611 = vpop.f32.mrf.mxu0
    %v1612 = vadd.f32 %v1405, %v1611
    %v1613 = vpop.f32.mrf.mxu0
    %1614 = vdwg.mxu0
    %v1615 = vpack.c.bf16 %v1492, %v1489
    %v1616 = vpack.c.bf16 %v1500, %v1497
    %v1617 = vpack.c.bf16 %v1508, %v1505
    %v1618 = vpack.c.bf16 %v1516, %v1513
    %v1619 = vpack.c.bf16 %v1524, %v1521
    %v1620 = vpack.c.bf16 %v1532, %v1529
    %v1621 = vpack.c.bf16 %v1540, %v1537
    %v1622 = vpack.c.bf16 %v1548, %v1545
    %v1623 = vpack.c.bf16 %v1556, %v1553
    %v1624 = vpack.c.bf16 %v1564, %v1561
    %v1625 = vpack.c.bf16 %v1572, %v1569
    %v1626 = vpack.c.bf16 %v1580, %v1577
    %v1627 = vpack.c.bf16 %v1588, %v1585
    %v1628 = vpack.c.bf16 %v1596, %v1593
    %v1629 = vpack.c.bf16 %v1604, %v1601
    %v1630 = vpack.c.bf16 %v1612, %v1609
    %v1647 = vunpack.c.l.b16 %v1615
    %v1648 = vunpack.c.h.b16 %v1615
    %v1649 = vunpack.c.l.b16 %v1616
    %v1650 = vunpack.c.h.b16 %v1616
    %v1651 = vunpack.c.l.b16 %v1617
    %v1652 = vunpack.c.h.b16 %v1617
    %v1653 = vunpack.c.l.b16 %v1618
    %v1654 = vunpack.c.h.b16 %v1618
    %v1655 = vunpack.c.l.b16 %v1619
    %v1656 = vunpack.c.h.b16 %v1619
    %v1657 = vunpack.c.l.b16 %v1620
    %v1658 = vunpack.c.h.b16 %v1620
    %v1659 = vunpack.c.l.b16 %v1621
    %v1660 = vunpack.c.h.b16 %v1621
    %v1661 = vunpack.c.l.b16 %v1622
    %v1662 = vunpack.c.h.b16 %v1622
    %v1663 = vunpack.c.l.b16 %v1623
    %v1664 = vunpack.c.h.b16 %v1623
    %v1665 = vunpack.c.l.b16 %v1624
    %v1666 = vunpack.c.h.b16 %v1624
    %v1667 = vunpack.c.l.b16 %v1625
    %v1668 = vunpack.c.h.b16 %v1625
    %v1669 = vunpack.c.l.b16 %v1626
    %v1670 = vunpack.c.h.b16 %v1626
    %v1671 = vunpack.c.l.b16 %v1627
    %v1672 = vunpack.c.h.b16 %v1627
    %v1673 = vunpack.c.l.b16 %v1628
    %v1674 = vunpack.c.h.b16 %v1628
    %v1675 = vunpack.c.l.b16 %v1629
    %v1676 = vunpack.c.h.b16 %v1629
    %v1677 = vunpack.c.l.b16 %v1630
    %v1678 = vunpack.c.h.b16 %v1630
    %v1679 = vpack.c.b16 %v1647, %v1647
    %v1680 = vpack.c.b16 %v1648, %v1648
    %v1681 = vpack.c.b16 %v1649, %v1649
    %v1682 = vpack.c.b16 %v1650, %v1650
    %v1683 = vpack.c.b16 %v1651, %v1651
    %v1684 = vpack.c.b16 %v1652, %v1652
    %v1685 = vpack.c.b16 %v1653, %v1653
    %v1686 = vpack.c.b16 %v1654, %v1654
    %v1687 = vpack.c.b16 %v1655, %v1655
    %v1688 = vpack.c.b16 %v1656, %v1656
    %v1689 = vpack.c.b16 %v1657, %v1657
    %v1690 = vpack.c.b16 %v1658, %v1658
    %v1691 = vpack.c.b16 %v1659, %v1659
    %v1692 = vpack.c.b16 %v1660, %v1660
    %v1693 = vpack.c.b16 %v1661, %v1661
    %v1694 = vpack.c.b16 %v1662, %v1662
    %v1695 = vpack.c.b16 %v1663, %v1663
    %v1696 = vpack.c.b16 %v1664, %v1664
    %v1697 = vpack.c.b16 %v1665, %v1665
    %v1698 = vpack.c.b16 %v1666, %v1666
    %v1699 = vpack.c.b16 %v1667, %v1667
    %v1700 = vpack.c.b16 %v1668, %v1668
    %v1701 = vpack.c.b16 %v1669, %v1669
    %v1702 = vpack.c.b16 %v1670, %v1670
    %v1703 = vpack.c.b16 %v1671, %v1671
    %v1704 = vpack.c.b16 %v1672, %v1672
    %v1705 = vpack.c.b16 %v1673, %v1673
    %v1706 = vpack.c.b16 %v1674, %v1674
    %v1707 = vpack.c.b16 %v1675, %v1675
    %v1708 = vpack.c.b16 %v1676, %v1676
    %v1709 = vpack.c.b16 %v1677, %v1677
    %v1710 = vpack.c.b16 %v1678, %v1678
    %1743 = vst [vmem:[#allocation2] sm:$0xf] %v1679
    %1744 = vst [vmem:[#allocation2 + $0x4] sm:$0xf] %v1680
    %1745 = vst [vmem:[#allocation2 + $0x8] sm:$0xf] %v1681
    %1746 = vst [vmem:[#allocation2 + $0xc] sm:$0xf] %v1682
    %1747 = vst [vmem:[#allocation2 + $0x10] sm:$0xf] %v1683
    %1748 = vst [vmem:[#allocation2 + $0x14] sm:$0xf] %v1684
    %1749 = vst [vmem:[#allocation2 + $0x18] sm:$0xf] %v1685
    %1750 = vst [vmem:[#allocation2 + $0x1c] sm:$0xf] %v1686
    %1751 = vst [vmem:[#allocation2 + $0x20] sm:$0xf] %v1687
    %1752 = vst [vmem:[#allocation2 + $0x24] sm:$0xf] %v1688
    %1753 = vst [vmem:[#allocation2 + $0x28] sm:$0xf] %v1689
    %1754 = vst [vmem:[#allocation2 + $0x2c] sm:$0xf] %v1690
    %1755 = vst [vmem:[#allocation2 + $0x30] sm:$0xf] %v1691
    %1756 = vst [vmem:[#allocation2 + $0x34] sm:$0xf] %v1692
    %1757 = vst [vmem:[#allocation2 + $0x38] sm:$0xf] %v1693
    %1758 = vst [vmem:[#allocation2 + $0x3c] sm:$0xf] %v1694
    %1759 = vst [vmem:[#allocation2 + $0x40] sm:$0xf] %v1695
    %1760 = vst [vmem:[#allocation2 + $0x44] sm:$0xf] %v1696
    %1761 = vst [vmem:[#allocation2 + $0x48] sm:$0xf] %v1697
    %1762 = vst [vmem:[#allocation2 + $0x4c] sm:$0xf] %v1698
    %1763 = vst [vmem:[#allocation2 + $0x50] sm:$0xf] %v1699
    %1764 = vst [vmem:[#allocation2 + $0x54] sm:$0xf] %v1700
    %1765 = vst [vmem:[#allocation2 + $0x58] sm:$0xf] %v1701
    %1766 = vst [vmem:[#allocation2 + $0x5c] sm:$0xf] %v1702
    %1767 = vst [vmem:[#allocation2 + $0x60] sm:$0xf] %v1703
    %1768 = vst [vmem:[#allocation2 + $0x64] sm:$0xf] %v1704
    %1769 = vst [vmem:[#allocation2 + $0x68] sm:$0xf] %v1705
    %1770 = vst [vmem:[#allocation2 + $0x6c] sm:$0xf] %v1706
    %1771 = vst [vmem:[#allocation2 + $0x70] sm:$0xf] %v1707
    %1772 = vst [vmem:[#allocation2 + $0x74] sm:$0xf] %v1708
    %1773 = vst [vmem:[#allocation2 + $0x78] sm:$0xf] %v1709
    %1774 = vst [vmem:[#allocation2 + $0x7c] sm:$0xf] %v1710
    // Predicated region
    $region26: #{tpu_custom_call.1} parent=1 // pred_check
      _
    $region27: #{tpu_custom_call.1} parent=1 // pred_check_branch
      %1776 = sbr.rel (0) target = $region29
    $region28: #{tpu_custom_call.1} parent=1 // pred_region
      %s1778 = ssub.s32 2048, 2048
      %1779 = vsyncadd [#allocation3], %s1778
      %s1780 = sshll.u32 [#allocation2], 4
      %s1781 = int_to_ptr.vmem [resolvable:$true] %s1780
      %1786 = dma.vmem_to_hbm [thread:$0]  %s1781, 2048, %s6, [#allocation3], 64, 64, 4
    $region29: #{tpu_custom_call.1} parent=1 // pred_fallthru
      _
    // Predicated region
    $region30: #{tpu_custom_call.1} parent=1 // pred_check
      _
    $region31: #{tpu_custom_call.1} parent=1 // pred_check_branch
      %1788 = sbr.rel (0) target = $region33
    $region32: #{tpu_custom_call.1} parent=1 // pred_region
      %1789 = dma.done [#allocation3], 2048
    $region33: #{tpu_custom_call.1} parent=1 // pred_fallthru
      _
    %1790 = vsyncpa [#allocation3], 1

</llo_original>
